<compile_context>
chip_gen: v7x
topology: tpu7x:2x2x1
jax: 0.10.0
libtpu: 0.0.40
codegen_flags: <defaults>
</compile_context>

<pallas_src>
import functools

import jax
import jax.numpy as jnp
from jax.experimental import pallas as pl
from jax.experimental.pallas import tpu as pltpu


# ----------------------- physics constants (deterministic) -------------------
TIME_DELTA = 0.02
M = 1.2      # mass
G = 9.81     # gravity
L = 0.25     # arm length
D_CFG = 0.1  # config.d (unused by the module: it overwrites d with m)
IXX = 0.03
IZZ = 0.06
KR = 0.01
KT = 0.02

# module bug reproduced: self.d = config.m
D = M

# precomputed compile-time constants (divide -> multiply)
DT = TIME_DELTA
INV_IXX = 1.0 / IXX
INV_M = 1.0 / M
INV_D = 1.0 / D
KT_OVER_M = KT / M
HALF_L = 0.5 * L
MG = M * G
IZZ_MINUS_IXX = IZZ - IXX

LANE = 128
SUBLANE = 8
MAX_TILE_ROWS = 1024                 # multiple of 8; ~10.5 MiB per grid step
VMEM_LIMIT_BYTES = 28 * 1024 * 1024  # covers tr=1024 double-buffered (~21 MiB)


# --------------------------------- kernel ------------------------------------
def quad_force_kernel(ctrl_ref, state_ref, out_ref):
    # ctrl_ref:  (3, tr, 128)   state_ref/out_ref: (9, tr, 128)
    uf = ctrl_ref[0]
    tauq = ctrl_ref[1]
    taur = ctrl_ref[2]

    x1 = state_ref[0]
    x2 = state_ref[1]
    x3 = state_ref[2]
    x4 = state_ref[3]
    x5 = state_ref[4]
    x6 = state_ref[5]
    x10 = state_ref[6]
    x11 = state_ref[7]
    x12 = state_ref[8]

    # Six trig evaluations per element.  On v5e/v6e these hide under DMA
    # slack; on v7x (higher HBM BW) check the bundle dump before adding work.
    cx1 = jnp.cos(x1)
    sx1 = jnp.sin(x1)
    cx2 = jnp.cos(x2)
    sx2 = jnp.sin(x2)
    cx3 = jnp.cos(x3)
    sx3 = jnp.sin(x3)

    # shared sub-expressions: one reciprocal replaces tan + 1/cos
    rcx2 = 1.0 / cx2            # exact divide (keeps 1e-5 tolerance)
    tx2 = sx2 * rcx2
    w = x5 * sx1 + x6 * cx1

    x1d = x4 + w * tx2
    x2d = x5 * cx1 - x6 * sx1
    x3d = w * rcx2
    x4d = INV_IXX * (-KR * x4 - x5 * x6 * IZZ_MINUS_IXX
                     + HALF_L * (uf - taur * INV_D))
    x5d = INV_IXX * (-KR * x4 + tauq)      # (izz - izz) term is identically zero
    x6d = INV_IXX * (-KR * x6 + taur)
    x10d = INV_M * (cx1 * sx2 * cx3 + sx1 * sx3) * uf - KT_OVER_M * x10
    x11d = INV_M * (cx1 * sx2 * sx3 - sx1 * cx3) * uf - KT_OVER_M * x11
    x12d = INV_M * (uf * cx1 * cx2 - KT * x12 - MG)

    # direct per-channel stores (no stack temporary, plain unmasked vst)
    out_ref[0] = x1 + DT * x1d
    out_ref[1] = x2 + DT * x2d
    out_ref[2] = x3 + DT * x3d
    out_ref[3] = x4 + DT * x4d
    out_ref[4] = x5 + DT * x5d
    out_ref[5] = x6 + DT * x6d
    out_ref[6] = x10 + DT * x10d
    out_ref[7] = x11 + DT * x11d
    out_ref[8] = x12 + DT * x12d


# -------------------------- tiling / layout helpers ---------------------------
@functools.lru_cache(maxsize=None)
def _grid_semantics():
    """Pick the grid-dimension semantics once (cached).

    On v7x, CORE_PARALLEL genuinely shards the row axis across both
    TensorCores (~2x for a bandwidth-bound kernel); plain "parallel" may not.
    A tiny eager probe kernel decides whether the installed jax/Mosaic accepts
    CORE_PARALLEL; otherwise fall back to "parallel" (harmless on 1-TC chips).
    """
    try:
        core_parallel = pltpu.CORE_PARALLEL
        probe = pl.pallas_call(
            quad_force_kernel,
            out_shape=jax.ShapeDtypeStruct((9, SUBLANE, LANE), jnp.float32),
            grid=(1,),
            in_specs=[
                pl.BlockSpec((3, SUBLANE, LANE), lambda i: (0, i, 0)),
                pl.BlockSpec((9, SUBLANE, LANE), lambda i: (0, i, 0)),
            ],
            out_specs=pl.BlockSpec((9, SUBLANE, LANE), lambda i: (0, i, 0)),
            compiler_params=pltpu.CompilerParams(
                dimension_semantics=(core_parallel,)),
        )
        jax.block_until_ready(
            probe(jnp.zeros((3, SUBLANE, LANE), jnp.float32),
                  jnp.zeros((9, SUBLANE, LANE), jnp.float32)))
        return core_parallel
    except Exception:
        return "parallel"


def _choose_rows_pad(n_elems: int, max_tile_rows: int = MAX_TILE_ROWS) -> int:
    """Padded lane-row count (multiple of the tile-row count we will use)."""
    rows = pl.cdiv(n_elems, LANE)
    rows8 = pl.cdiv(rows, SUBLANE) * SUBLANE
    if rows8 >= 4 * SUBLANE:
        # keep >= ~4 grid steps so BlockSpec double-buffering stays engaged
        cap = max(SUBLANE, (rows8 // 4) // SUBLANE * SUBLANE)
    else:
        cap = rows8
    tr = max(SUBLANE, min(max_tile_rows, cap))
    return pl.cdiv(rows, tr) * tr


def _tile_rows_for(rows_pad: int, max_tile_rows: int = MAX_TILE_ROWS) -> int:
    """Largest tile-row count that is a multiple of 8, divides rows_pad,
    is <= max_tile_rows, and leaves >= 4 grid steps when possible."""
    assert rows_pad % SUBLANE == 0 and rows_pad > 0
    cands = [t for t in range(SUBLANE, min(max_tile_rows, rows_pad) + 1, SUBLANE)
             if rows_pad % t == 0]
    for min_steps in (4, 2, 1):
        ok = [t for t in cands if rows_pad // t >= min_steps]
        if ok:
            return max(ok)
    return SUBLANE


def to_channel_major(x: jax.Array, *, max_tile_rows: int = MAX_TILE_ROWS) -> jax.Array:
    """(B, T, C) -> channel-major slab (C, rows_pad, 128), zero padded.

    Zero padding is safe for the state slab: cos(0) = 1, so no inf/NaN is
    produced in the padded region.
    """
    B, T, C = x.shape
    n = B * T
    rows_pad = _choose_rows_pad(n, max_tile_rows)
    flat = jnp.transpose(x.astype(jnp.float32), (2, 0, 1)).reshape(C, n)
    n_pad = rows_pad * LANE
    if n_pad != n:
        flat = jnp.pad(flat, ((0, 0), (0, n_pad - n)))
    return flat.reshape(C, rows_pad, LANE)


def from_channel_major(slab: jax.Array, B: int, T: int) -> jax.Array:
    """(C, rows_pad, 128) -> (B, T, C)."""
    C = slab.shape[0]
    flat = slab.reshape(C, -1)[:, :B * T].reshape(C, B, T)
    return jnp.transpose(flat, (1, 2, 0))


# ------------------------------ pallas entry ----------------------------------
def quadcopter_force_input_cm(control_cm: jax.Array, state_cm: jax.Array,
                              *, max_tile_rows: int = MAX_TILE_ROWS) -> jax.Array:
    """Resident-layout entry: (3, R, 128), (9, R, 128) -> (9, R, 128).

    Use this (optionally under jax.jit with donate_argnums=(1,)) when stepping
    the integrator many times: the state stays in the channel-major slab and
    no transpose/pad HBM passes are paid per step.
    """
    assert control_cm.shape[0] == 3 and state_cm.shape[0] == 9
    assert control_cm.shape[1:] == state_cm.shape[1:]
    rows_pad, lane = state_cm.shape[1], state_cm.shape[2]
    assert lane == LANE and rows_pad % SUBLANE == 0

    tr = _tile_rows_for(rows_pad, max_tile_rows)
    grid_n = rows_pad // tr
    n = rows_pad * LANE

    cost = pl.CostEstimate(
        flops=60 * n,
        transcendentals=7 * n,
        bytes_accessed=(3 + 9 + 9) * 4 * n,
    )

    return pl.pallas_call(
        quad_force_kernel,
        out_shape=jax.ShapeDtypeStruct((9, rows_pad, LANE), jnp.float32),
        grid=(grid_n,),
        in_specs=[
            pl.BlockSpec((3, tr, LANE), lambda i: (0, i, 0)),
            pl.BlockSpec((9, tr, LANE), lambda i: (0, i, 0)),
        ],
        out_specs=pl.BlockSpec((9, tr, LANE), lambda i: (0, i, 0)),
        # new state aliases the old-state slab: in-place update under
        # jit + donation, no extra HBM allocation when iterated.
        input_output_aliases={1: 0},
        compiler_params=pltpu.CompilerParams(
            dimension_semantics=(_grid_semantics(),),
            vmem_limit_bytes=VMEM_LIMIT_BYTES,
        ),
        cost_estimate=cost,
    )(control_cm, state_cm)


def quadcopter_force_input(control: jax.Array, state: jax.Array,
                           *, max_tile_rows: int = MAX_TILE_ROWS) -> jax.Array:
    """One-shot (B, T, C) interface matching the PyTorch module.

    Layout conversion happens only here at the boundary; for multi-step
    simulation use to_channel_major / quadcopter_force_input_cm /
    from_channel_major to avoid paying the transpose HBM passes per step.
    """
    B, T, _ = state.shape
    control_cm = to_channel_major(control, max_tile_rows=max_tile_rows)
    state_cm = to_channel_major(state, max_tile_rows=max_tile_rows)
    out_cm = quadcopter_force_input_cm(control_cm, state_cm,
                                       max_tile_rows=max_tile_rows)
    return from_channel_major(out_cm, B, T)


# ------------------------------ pure-JAX reference ----------------------------
def _reference(control, state):
    """Pure-JAX reference matching the PyTorch forward exactly."""
    uf, tauq, taur = control[..., 0], control[..., 1], control[..., 2]
    x1, x2, x3 = state[..., 0], state[..., 1], state[..., 2]
    x4, x5, x6 = state[..., 3], state[..., 4], state[..., 5]
    x10, x11, x12 = state[..., 6], state[..., 7], state[..., 8]
    cx1, sx1 = jnp.cos(x1), jnp.sin(x1)
    cx2, sx2, tx2 = jnp.cos(x2), jnp.sin(x2), jnp.tan(x2)
    cx3, sx3 = jnp.cos(x3), jnp.sin(x3)
    x1d = x4 + x5 * sx1 * tx2 + x6 * cx1 * tx2
    x2d = x5 * cx1 - x6 * sx1
    x3d = 1.0 / cx2 * (x5 * sx1 + x6 * cx1)
    x4d = 1.0 / IXX * (-KR * x4 - x5 * x6 * (IZZ - IXX) + 0.5 * L * (uf - taur / D))
    x5d = 1.0 / IXX * (-KR * x4 - x5 * x6 * (IZZ - IZZ) + tauq)
    x6d = 1.0 / IXX * (-KR * x6 + taur)
    x10d = 1.0 / M * (cx1 * sx2 * cx3 + sx1 * sx3) * uf - KT / M * x10
    x11d = 1.0 / M * (cx1 * sx2 * sx3 - sx1 * cx3) * uf - KT / M * x11
    x12d = 1.0 / M * (uf * cx1 * cx2 - KT * x12 - M * G)
    dt = TIME_DELTA
    return jnp.stack(
        (x1 + dt * x1d, x2 + dt * x2d, x3 + dt * x3d,
         x4 + dt * x4d, x5 + dt * x5d, x6 + dt * x6d,
         x10 + dt * x10d, x11 + dt * x11d, x12 + dt * x12d), axis=2)


if __name__ == "__main__":
    key = jax.random.PRNGKey(0)
    k1, k2, k3, k4 = jax.random.split(key, 4)

    # small shape (matches the module's (batch, time, channel) convention)
    B, T = 2, 8
    control = jax.random.normal(k1, (B, T, 3), dtype=jnp.float32)
    state = 0.3 * jax.random.normal(k2, (B, T, 9), dtype=jnp.float32)

    out = jax.block_until_ready(quadcopter_force_input(control, state))
    ref = _reference(control, state)
    assert out.shape == (B, T, 9)
    assert jnp.allclose(out, ref, atol=1e-5, rtol=1e-5)

    # larger shape to exercise the multi-block pipelined grid path (grid_n >= 4)
    B2, T2 = 8, 8192
    control2 = jax.random.normal(k3, (B2, T2, 3), dtype=jnp.float32)
    state2 = 0.3 * jax.random.normal(k4, (B2, T2, 9), dtype=jnp.float32)

    out2 = jax.block_until_ready(quadcopter_force_input(control2, state2))
    ref2 = _reference(control2, state2)
    assert out2.shape == (B2, T2, 9)
    assert jnp.allclose(out2, ref2, atol=1e-5, rtol=1e-5)

    # Resident channel-major integration loop: layout converted only at the
    # simulation boundary; the state slab is donated so the kernel writes the
    # new state in place (input_output_aliases={1: 0}).
    _grid_semantics()  # warm the cached (eager-only) semantics probe
    step = jax.jit(quadcopter_force_input_cm, donate_argnums=(1,))
    n_steps = 4
    control_cm = to_channel_major(control2)
    state_cm = to_channel_major(state2)
    for _ in range(n_steps):
        state_cm = step(control_cm, state_cm)
    out_loop = jax.block_until_ready(from_channel_major(state_cm, B2, T2))

    ref_loop = state2
    for _ in range(n_steps):
        ref_loop = _reference(control2, ref_loop)
    assert out_loop.shape == (B2, T2, 9)
    assert jnp.allclose(out_loop, ref_loop, atol=1e-4, rtol=1e-4)

    print("KERNEL_OK")
</pallas_src>

<mosaic_0001>
module attributes {stable_mosaic.version = 11 : i64} {
  func.func @quad_force_kernel(%arg0: i32, %arg1: memref<3x8x128xf32, #tpu.memory_space<vmem>>, %arg2: memref<9x8x128xf32, #tpu.memory_space<vmem>>, %arg3: memref<9x8x128xf32, #tpu.memory_space<vmem>>) attributes {dimension_semantics = [#tpu.dimension_semantics<core_parallel>], iteration_bounds = array<i64: 1>, scalar_prefetch = 0 : i64, scratch_operands = 0 : i64, tpu.core_type = #tpu.core_type<tc>, window_params = [{transform_indices = @transform_0, window_bounds = array<i64: 3, 8, 128>}, {transform_indices = @transform_1, window_bounds = array<i64: 9, 8, 128>}, {transform_indices = @transform_2, window_bounds = array<i64: 9, 8, 128>}]} {
    %c0 = arith.constant 0 : index
    %c0_0 = arith.constant 0 : index
    %c0_1 = arith.constant 0 : index
    %0 = vector.load %arg1[%c0, %c0_0, %c0_1] : memref<3x8x128xf32, #tpu.memory_space<vmem>>, vector<1x8x128xf32>
    %1 = vector.shape_cast %0 : vector<1x8x128xf32> to vector<8x128xf32>
    %c1 = arith.constant 1 : index
    %c0_2 = arith.constant 0 : index
    %c0_3 = arith.constant 0 : index
    %2 = vector.load %arg1[%c1, %c0_2, %c0_3] : memref<3x8x128xf32, #tpu.memory_space<vmem>>, vector<1x8x128xf32>
    %3 = vector.shape_cast %2 : vector<1x8x128xf32> to vector<8x128xf32>
    %c2 = arith.constant 2 : index
    %c0_4 = arith.constant 0 : index
    %c0_5 = arith.constant 0 : index
    %4 = vector.load %arg1[%c2, %c0_4, %c0_5] : memref<3x8x128xf32, #tpu.memory_space<vmem>>, vector<1x8x128xf32>
    %5 = vector.shape_cast %4 : vector<1x8x128xf32> to vector<8x128xf32>
    %c0_6 = arith.constant 0 : index
    %c0_7 = arith.constant 0 : index
    %c0_8 = arith.constant 0 : index
    %6 = vector.load %arg2[%c0_6, %c0_7, %c0_8] : memref<9x8x128xf32, #tpu.memory_space<vmem>>, vector<1x8x128xf32>
    %7 = vector.shape_cast %6 : vector<1x8x128xf32> to vector<8x128xf32>
    %c1_9 = arith.constant 1 : index
    %c0_10 = arith.constant 0 : index
    %c0_11 = arith.constant 0 : index
    %8 = vector.load %arg2[%c1_9, %c0_10, %c0_11] : memref<9x8x128xf32, #tpu.memory_space<vmem>>, vector<1x8x128xf32>
    %9 = vector.shape_cast %8 : vector<1x8x128xf32> to vector<8x128xf32>
    %c2_12 = arith.constant 2 : index
    %c0_13 = arith.constant 0 : index
    %c0_14 = arith.constant 0 : index
    %10 = vector.load %arg2[%c2_12, %c0_13, %c0_14] : memref<9x8x128xf32, #tpu.memory_space<vmem>>, vector<1x8x128xf32>
    %11 = vector.shape_cast %10 : vector<1x8x128xf32> to vector<8x128xf32>
    %c3 = arith.constant 3 : index
    %c0_15 = arith.constant 0 : index
    %c0_16 = arith.constant 0 : index
    %12 = vector.load %arg2[%c3, %c0_15, %c0_16] : memref<9x8x128xf32, #tpu.memory_space<vmem>>, vector<1x8x128xf32>
    %13 = vector.shape_cast %12 : vector<1x8x128xf32> to vector<8x128xf32>
    %c4 = arith.constant 4 : index
    %c0_17 = arith.constant 0 : index
    %c0_18 = arith.constant 0 : index
    %14 = vector.load %arg2[%c4, %c0_17, %c0_18] : memref<9x8x128xf32, #tpu.memory_space<vmem>>, vector<1x8x128xf32>
    %15 = vector.shape_cast %14 : vector<1x8x128xf32> to vector<8x128xf32>
    %c5 = arith.constant 5 : index
    %c0_19 = arith.constant 0 : index
    %c0_20 = arith.constant 0 : index
    %16 = vector.load %arg2[%c5, %c0_19, %c0_20] : memref<9x8x128xf32, #tpu.memory_space<vmem>>, vector<1x8x128xf32>
    %17 = vector.shape_cast %16 : vector<1x8x128xf32> to vector<8x128xf32>
    %c6 = arith.constant 6 : index
    %c0_21 = arith.constant 0 : index
    %c0_22 = arith.constant 0 : index
    %18 = vector.load %arg2[%c6, %c0_21, %c0_22] : memref<9x8x128xf32, #tpu.memory_space<vmem>>, vector<1x8x128xf32>
    %19 = vector.shape_cast %18 : vector<1x8x128xf32> to vector<8x128xf32>
    %c7 = arith.constant 7 : index
    %c0_23 = arith.constant 0 : index
    %c0_24 = arith.constant 0 : index
    %20 = vector.load %arg2[%c7, %c0_23, %c0_24] : memref<9x8x128xf32, #tpu.memory_space<vmem>>, vector<1x8x128xf32>
    %21 = vector.shape_cast %20 : vector<1x8x128xf32> to vector<8x128xf32>
    %c8 = arith.constant 8 : index
    %c0_25 = arith.constant 0 : index
    %c0_26 = arith.constant 0 : index
    %22 = vector.load %arg2[%c8, %c0_25, %c0_26] : memref<9x8x128xf32, #tpu.memory_space<vmem>>, vector<1x8x128xf32>
    %23 = vector.shape_cast %22 : vector<1x8x128xf32> to vector<8x128xf32>
    %24 = math.cos %7 : vector<8x128xf32>
    %25 = math.sin %7 : vector<8x128xf32>
    %26 = math.cos %9 : vector<8x128xf32>
    %27 = math.sin %9 : vector<8x128xf32>
    %28 = math.cos %11 : vector<8x128xf32>
    %29 = math.sin %11 : vector<8x128xf32>
    %cst = arith.constant 1.000000e+00 : f32
    %30 = vector.broadcast %cst : f32 to vector<8x128xf32>
    %31 = arith.divf %30, %26 : vector<8x128xf32>
    %32 = arith.mulf %27, %31 : vector<8x128xf32>
    %33 = arith.mulf %15, %25 : vector<8x128xf32>
    %34 = arith.mulf %17, %24 : vector<8x128xf32>
    %35 = arith.addf %33, %34 : vector<8x128xf32>
    %36 = arith.mulf %35, %32 : vector<8x128xf32>
    %37 = arith.addf %13, %36 : vector<8x128xf32>
    %38 = arith.mulf %15, %24 : vector<8x128xf32>
    %39 = arith.mulf %17, %25 : vector<8x128xf32>
    %40 = arith.subf %38, %39 : vector<8x128xf32>
    %41 = arith.mulf %35, %31 : vector<8x128xf32>
    %cst_27 = arith.constant -0.00999999977 : f32
    %42 = vector.broadcast %cst_27 : f32 to vector<8x128xf32>
    %43 = arith.mulf %42, %13 : vector<8x128xf32>
    %44 = arith.mulf %15, %17 : vector<8x128xf32>
    %cst_28 = arith.constant 3.000000e-02 : f32
    %45 = vector.broadcast %cst_28 : f32 to vector<8x128xf32>
    %46 = arith.mulf %44, %45 : vector<8x128xf32>
    %47 = arith.subf %43, %46 : vector<8x128xf32>
    %cst_29 = arith.constant 0.833333313 : f32
    %48 = vector.broadcast %cst_29 : f32 to vector<8x128xf32>
    %49 = arith.mulf %5, %48 : vector<8x128xf32>
    %50 = arith.subf %1, %49 : vector<8x128xf32>
    %cst_30 = arith.constant 1.250000e-01 : f32
    %51 = vector.broadcast %cst_30 : f32 to vector<8x128xf32>
    %52 = arith.mulf %51, %50 : vector<8x128xf32>
    %53 = arith.addf %47, %52 : vector<8x128xf32>
    %cst_31 = arith.constant 33.3333321 : f32
    %54 = vector.broadcast %cst_31 : f32 to vector<8x128xf32>
    %55 = arith.mulf %54, %53 : vector<8x128xf32>
    %cst_32 = arith.constant -0.00999999977 : f32
    %56 = vector.broadcast %cst_32 : f32 to vector<8x128xf32>
    %57 = arith.mulf %56, %13 : vector<8x128xf32>
    %58 = arith.addf %57, %3 : vector<8x128xf32>
    %cst_33 = arith.constant 33.3333321 : f32
    %59 = vector.broadcast %cst_33 : f32 to vector<8x128xf32>
    %60 = arith.mulf %59, %58 : vector<8x128xf32>
    %cst_34 = arith.constant -0.00999999977 : f32
    %61 = vector.broadcast %cst_34 : f32 to vector<8x128xf32>
    %62 = arith.mulf %61, %17 : vector<8x128xf32>
    %63 = arith.addf %62, %5 : vector<8x128xf32>
    %cst_35 = arith.constant 33.3333321 : f32
    %64 = vector.broadcast %cst_35 : f32 to vector<8x128xf32>
    %65 = arith.mulf %64, %63 : vector<8x128xf32>
    %66 = arith.mulf %24, %27 : vector<8x128xf32>
    %67 = arith.mulf %66, %28 : vector<8x128xf32>
    %68 = arith.mulf %25, %29 : vector<8x128xf32>
    %69 = arith.addf %67, %68 : vector<8x128xf32>
    %cst_36 = arith.constant 0.833333313 : f32
    %70 = vector.broadcast %cst_36 : f32 to vector<8x128xf32>
    %71 = arith.mulf %70, %69 : vector<8x128xf32>
    %72 = arith.mulf %71, %1 : vector<8x128xf32>
    %cst_37 = arith.constant 0.0166666675 : f32
    %73 = vector.broadcast %cst_37 : f32 to vector<8x128xf32>
    %74 = arith.mulf %73, %19 : vector<8x128xf32>
    %75 = arith.subf %72, %74 : vector<8x128xf32>
    %76 = arith.mulf %24, %27 : vector<8x128xf32>
    %77 = arith.mulf %76, %29 : vector<8x128xf32>
    %78 = arith.mulf %25, %28 : vector<8x128xf32>
    %79 = arith.subf %77, %78 : vector<8x128xf32>
    %cst_38 = arith.constant 0.833333313 : f32
    %80 = vector.broadcast %cst_38 : f32 to vector<8x128xf32>
    %81 = arith.mulf %80, %79 : vector<8x128xf32>
    %82 = arith.mulf %81, %1 : vector<8x128xf32>
    %cst_39 = arith.constant 0.0166666675 : f32
    %83 = vector.broadcast %cst_39 : f32 to vector<8x128xf32>
    %84 = arith.mulf %83, %21 : vector<8x128xf32>
    %85 = arith.subf %82, %84 : vector<8x128xf32>
    %86 = arith.mulf %1, %24 : vector<8x128xf32>
    %87 = arith.mulf %86, %26 : vector<8x128xf32>
    %cst_40 = arith.constant 2.000000e-02 : f32
    %88 = vector.broadcast %cst_40 : f32 to vector<8x128xf32>
    %89 = arith.mulf %88, %23 : vector<8x128xf32>
    %90 = arith.subf %87, %89 : vector<8x128xf32>
    %cst_41 = arith.constant 1.177200e+01 : f32
    %91 = vector.broadcast %cst_41 : f32 to vector<8x128xf32>
    %92 = arith.subf %90, %91 : vector<8x128xf32>
    %cst_42 = arith.constant 0.833333313 : f32
    %93 = vector.broadcast %cst_42 : f32 to vector<8x128xf32>
    %94 = arith.mulf %93, %92 : vector<8x128xf32>
    %cst_43 = arith.constant 2.000000e-02 : f32
    %95 = vector.broadcast %cst_43 : f32 to vector<8x128xf32>
    %96 = arith.mulf %95, %37 : vector<8x128xf32>
    %97 = arith.addf %7, %96 : vector<8x128xf32>
    %c0_44 = arith.constant 0 : index
    %c0_45 = arith.constant 0 : index
    %c0_46 = arith.constant 0 : index
    %98 = vector.load %arg3[%c0_44, %c0_45, %c0_46] : memref<9x8x128xf32, #tpu.memory_space<vmem>>, vector<1x8x128xf32>
    %99 = vector.shape_cast %98 : vector<1x8x128xf32> to vector<8x128xf32>
    %100 = vector.shape_cast %97 : vector<8x128xf32> to vector<1x8x128xf32>
    tpu.vector_store %arg3[%c0_44, %c0_45, %c0_46], %100 {strides = array<i32>} : memref<9x8x128xf32, #tpu.memory_space<vmem>>, vector<1x8x128xf32>,
    %cst_47 = arith.constant 2.000000e-02 : f32
    %101 = vector.broadcast %cst_47 : f32 to vector<8x128xf32>
    %102 = arith.mulf %101, %40 : vector<8x128xf32>
    %103 = arith.addf %9, %102 : vector<8x128xf32>
    %c1_48 = arith.constant 1 : index
    %c0_49 = arith.constant 0 : index
    %c0_50 = arith.constant 0 : index
    %104 = vector.load %arg3[%c1_48, %c0_49, %c0_50] : memref<9x8x128xf32, #tpu.memory_space<vmem>>, vector<1x8x128xf32>
    %105 = vector.shape_cast %104 : vector<1x8x128xf32> to vector<8x128xf32>
    %106 = vector.shape_cast %103 : vector<8x128xf32> to vector<1x8x128xf32>
    tpu.vector_store %arg3[%c1_48, %c0_49, %c0_50], %106 {strides = array<i32>} : memref<9x8x128xf32, #tpu.memory_space<vmem>>, vector<1x8x128xf32>,
    %cst_51 = arith.constant 2.000000e-02 : f32
    %107 = vector.broadcast %cst_51 : f32 to vector<8x128xf32>
    %108 = arith.mulf %107, %41 : vector<8x128xf32>
    %109 = arith.addf %11, %108 : vector<8x128xf32>
    %c2_52 = arith.constant 2 : index
    %c0_53 = arith.constant 0 : index
    %c0_54 = arith.constant 0 : index
    %110 = vector.load %arg3[%c2_52, %c0_53, %c0_54] : memref<9x8x128xf32, #tpu.memory_space<vmem>>, vector<1x8x128xf32>
    %111 = vector.shape_cast %110 : vector<1x8x128xf32> to vector<8x128xf32>
    %112 = vector.shape_cast %109 : vector<8x128xf32> to vector<1x8x128xf32>
    tpu.vector_store %arg3[%c2_52, %c0_53, %c0_54], %112 {strides = array<i32>} : memref<9x8x128xf32, #tpu.memory_space<vmem>>, vector<1x8x128xf32>,
    %cst_55 = arith.constant 2.000000e-02 : f32
    %113 = vector.broadcast %cst_55 : f32 to vector<8x128xf32>
    %114 = arith.mulf %113, %55 : vector<8x128xf32>
    %115 = arith.addf %13, %114 : vector<8x128xf32>
    %c3_56 = arith.constant 3 : index
    %c0_57 = arith.constant 0 : index
    %c0_58 = arith.constant 0 : index
    %116 = vector.load %arg3[%c3_56, %c0_57, %c0_58] : memref<9x8x128xf32, #tpu.memory_space<vmem>>, vector<1x8x128xf32>
    %117 = vector.shape_cast %116 : vector<1x8x128xf32> to vector<8x128xf32>
    %118 = vector.shape_cast %115 : vector<8x128xf32> to vector<1x8x128xf32>
    tpu.vector_store %arg3[%c3_56, %c0_57, %c0_58], %118 {strides = array<i32>} : memref<9x8x128xf32, #tpu.memory_space<vmem>>, vector<1x8x128xf32>,
    %cst_59 = arith.constant 2.000000e-02 : f32
    %119 = vector.broadcast %cst_59 : f32 to vector<8x128xf32>
    %120 = arith.mulf %119, %60 : vector<8x128xf32>
    %121 = arith.addf %15, %120 : vector<8x128xf32>
    %c4_60 = arith.constant 4 : index
    %c0_61 = arith.constant 0 : index
    %c0_62 = arith.constant 0 : index
    %122 = vector.load %arg3[%c4_60, %c0_61, %c0_62] : memref<9x8x128xf32, #tpu.memory_space<vmem>>, vector<1x8x128xf32>
    %123 = vector.shape_cast %122 : vector<1x8x128xf32> to vector<8x128xf32>
    %124 = vector.shape_cast %121 : vector<8x128xf32> to vector<1x8x128xf32>
    tpu.vector_store %arg3[%c4_60, %c0_61, %c0_62], %124 {strides = array<i32>} : memref<9x8x128xf32, #tpu.memory_space<vmem>>, vector<1x8x128xf32>,
    %cst_63 = arith.constant 2.000000e-02 : f32
    %125 = vector.broadcast %cst_63 : f32 to vector<8x128xf32>
    %126 = arith.mulf %125, %65 : vector<8x128xf32>
    %127 = arith.addf %17, %126 : vector<8x128xf32>
    %c5_64 = arith.constant 5 : index
    %c0_65 = arith.constant 0 : index
    %c0_66 = arith.constant 0 : index
    %128 = vector.load %arg3[%c5_64, %c0_65, %c0_66] : memref<9x8x128xf32, #tpu.memory_space<vmem>>, vector<1x8x128xf32>
    %129 = vector.shape_cast %128 : vector<1x8x128xf32> to vector<8x128xf32>
    %130 = vector.shape_cast %127 : vector<8x128xf32> to vector<1x8x128xf32>
    tpu.vector_store %arg3[%c5_64, %c0_65, %c0_66], %130 {strides = array<i32>} : memref<9x8x128xf32, #tpu.memory_space<vmem>>, vector<1x8x128xf32>,
    %cst_67 = arith.constant 2.000000e-02 : f32
    %131 = vector.broadcast %cst_67 : f32 to vector<8x128xf32>
    %132 = arith.mulf %131, %75 : vector<8x128xf32>
    %133 = arith.addf %19, %132 : vector<8x128xf32>
    %c6_68 = arith.constant 6 : index
    %c0_69 = arith.constant 0 : index
    %c0_70 = arith.constant 0 : index
    %134 = vector.load %arg3[%c6_68, %c0_69, %c0_70] : memref<9x8x128xf32, #tpu.memory_space<vmem>>, vector<1x8x128xf32>
    %135 = vector.shape_cast %134 : vector<1x8x128xf32> to vector<8x128xf32>
    %136 = vector.shape_cast %133 : vector<8x128xf32> to vector<1x8x128xf32>
    tpu.vector_store %arg3[%c6_68, %c0_69, %c0_70], %136 {strides = array<i32>} : memref<9x8x128xf32, #tpu.memory_space<vmem>>, vector<1x8x128xf32>,
    %cst_71 = arith.constant 2.000000e-02 : f32
    %137 = vector.broadcast %cst_71 : f32 to vector<8x128xf32>
    %138 = arith.mulf %137, %85 : vector<8x128xf32>
    %139 = arith.addf %21, %138 : vector<8x128xf32>
    %c7_72 = arith.constant 7 : index
    %c0_73 = arith.constant 0 : index
    %c0_74 = arith.constant 0 : index
    %140 = vector.load %arg3[%c7_72, %c0_73, %c0_74] : memref<9x8x128xf32, #tpu.memory_space<vmem>>, vector<1x8x128xf32>
    %141 = vector.shape_cast %140 : vector<1x8x128xf32> to vector<8x128xf32>
    %142 = vector.shape_cast %139 : vector<8x128xf32> to vector<1x8x128xf32>
    tpu.vector_store %arg3[%c7_72, %c0_73, %c0_74], %142 {strides = array<i32>} : memref<9x8x128xf32, #tpu.memory_space<vmem>>, vector<1x8x128xf32>,
    %cst_75 = arith.constant 2.000000e-02 : f32
    %143 = vector.broadcast %cst_75 : f32 to vector<8x128xf32>
    %144 = arith.mulf %143, %94 : vector<8x128xf32>
    %145 = arith.addf %23, %144 : vector<8x128xf32>
    %c8_76 = arith.constant 8 : index
    %c0_77 = arith.constant 0 : index
    %c0_78 = arith.constant 0 : index
    %146 = vector.load %arg3[%c8_76, %c0_77, %c0_78] : memref<9x8x128xf32, #tpu.memory_space<vmem>>, vector<1x8x128xf32>
    %147 = vector.shape_cast %146 : vector<1x8x128xf32> to vector<8x128xf32>
    %148 = vector.shape_cast %145 : vector<8x128xf32> to vector<1x8x128xf32>
    tpu.vector_store %arg3[%c8_76, %c0_77, %c0_78], %148 {strides = array<i32>} : memref<9x8x128xf32, #tpu.memory_space<vmem>>, vector<1x8x128xf32>,
    return
  }
  func.func @transform_0(%arg0: i32) -> (i32, i32, i32) {
    %c0_i32 = arith.constant 0 : i32
    %c0_i32_0 = arith.constant 0 : i32
    %c0_i32_1 = arith.constant 0 : i32
    return %c0_i32, %arg0, %c0_i32_0 : i32, i32, i32
  }
  func.func @transform_1(%arg0: i32) -> (i32, i32, i32) {
    %c0_i32 = arith.constant 0 : i32
    %c0_i32_0 = arith.constant 0 : i32
    %c0_i32_1 = arith.constant 0 : i32
    return %c0_i32, %arg0, %c0_i32_0 : i32, i32, i32
  }
  func.func @transform_2(%arg0: i32) -> (i32, i32, i32) {
    %c0_i32 = arith.constant 0 : i32
    %c0_i32_0 = arith.constant 0 : i32
    %c0_i32_1 = arith.constant 0 : i32
    return %c0_i32, %arg0, %c0_i32_0 : i32, i32, i32
  }
}

module attributes {stable_mosaic.version = 11 : i64} {
  func.func @quad_force_kernel(%arg0: i32, %arg1: memref<3x8x128xf32, #tpu.memory_space<vmem>>, %arg2: memref<9x8x128xf32, #tpu.memory_space<vmem>>, %arg3: memref<9x8x128xf32, #tpu.memory_space<vmem>>) attributes {dimension_semantics = [#tpu.dimension_semantics<parallel>], iteration_bounds = array<i64: 1>, scalar_prefetch = 0 : i64, scratch_operands = 0 : i64, tpu.core_type = #tpu.core_type<tc>, window_params = [{transform_indices = @transform_0, window_bounds = array<i64: 3, 8, 128>}, {transform_indices = @transform_1, window_bounds = array<i64: 9, 8, 128>}, {transform_indices = @transform_2, window_bounds = array<i64: 9, 8, 128>}]} {
    %c0 = arith.constant 0 : index
    %c0_0 = arith.constant 0 : index
    %c0_1 = arith.constant 0 : index
    %0 = vector.load %arg1[%c0, %c0_0, %c0_1] : memref<3x8x128xf32, #tpu.memory_space<vmem>>, vector<1x8x128xf32>
    %1 = vector.shape_cast %0 : vector<1x8x128xf32> to vector<8x128xf32>
    %c1 = arith.constant 1 : index
    %c0_2 = arith.constant 0 : index
    %c0_3 = arith.constant 0 : index
    %2 = vector.load %arg1[%c1, %c0_2, %c0_3] : memref<3x8x128xf32, #tpu.memory_space<vmem>>, vector<1x8x128xf32>
    %3 = vector.shape_cast %2 : vector<1x8x128xf32> to vector<8x128xf32>
    %c2 = arith.constant 2 : index
    %c0_4 = arith.constant 0 : index
    %c0_5 = arith.constant 0 : index
    %4 = vector.load %arg1[%c2, %c0_4, %c0_5] : memref<3x8x128xf32, #tpu.memory_space<vmem>>, vector<1x8x128xf32>
    %5 = vector.shape_cast %4 : vector<1x8x128xf32> to vector<8x128xf32>
    %c0_6 = arith.constant 0 : index
    %c0_7 = arith.constant 0 : index
    %c0_8 = arith.constant 0 : index
    %6 = vector.load %arg2[%c0_6, %c0_7, %c0_8] : memref<9x8x128xf32, #tpu.memory_space<vmem>>, vector<1x8x128xf32>
    %7 = vector.shape_cast %6 : vector<1x8x128xf32> to vector<8x128xf32>
    %c1_9 = arith.constant 1 : index
    %c0_10 = arith.constant 0 : index
    %c0_11 = arith.constant 0 : index
    %8 = vector.load %arg2[%c1_9, %c0_10, %c0_11] : memref<9x8x128xf32, #tpu.memory_space<vmem>>, vector<1x8x128xf32>
    %9 = vector.shape_cast %8 : vector<1x8x128xf32> to vector<8x128xf32>
    %c2_12 = arith.constant 2 : index
    %c0_13 = arith.constant 0 : index
    %c0_14 = arith.constant 0 : index
    %10 = vector.load %arg2[%c2_12, %c0_13, %c0_14] : memref<9x8x128xf32, #tpu.memory_space<vmem>>, vector<1x8x128xf32>
    %11 = vector.shape_cast %10 : vector<1x8x128xf32> to vector<8x128xf32>
    %c3 = arith.constant 3 : index
    %c0_15 = arith.constant 0 : index
    %c0_16 = arith.constant 0 : index
    %12 = vector.load %arg2[%c3, %c0_15, %c0_16] : memref<9x8x128xf32, #tpu.memory_space<vmem>>, vector<1x8x128xf32>
    %13 = vector.shape_cast %12 : vector<1x8x128xf32> to vector<8x128xf32>
    %c4 = arith.constant 4 : index
    %c0_17 = arith.constant 0 : index
    %c0_18 = arith.constant 0 : index
    %14 = vector.load %arg2[%c4, %c0_17, %c0_18] : memref<9x8x128xf32, #tpu.memory_space<vmem>>, vector<1x8x128xf32>
    %15 = vector.shape_cast %14 : vector<1x8x128xf32> to vector<8x128xf32>
    %c5 = arith.constant 5 : index
    %c0_19 = arith.constant 0 : index
    %c0_20 = arith.constant 0 : index
    %16 = vector.load %arg2[%c5, %c0_19, %c0_20] : memref<9x8x128xf32, #tpu.memory_space<vmem>>, vector<1x8x128xf32>
    %17 = vector.shape_cast %16 : vector<1x8x128xf32> to vector<8x128xf32>
    %c6 = arith.constant 6 : index
    %c0_21 = arith.constant 0 : index
    %c0_22 = arith.constant 0 : index
    %18 = vector.load %arg2[%c6, %c0_21, %c0_22] : memref<9x8x128xf32, #tpu.memory_space<vmem>>, vector<1x8x128xf32>
    %19 = vector.shape_cast %18 : vector<1x8x128xf32> to vector<8x128xf32>
    %c7 = arith.constant 7 : index
    %c0_23 = arith.constant 0 : index
    %c0_24 = arith.constant 0 : index
    %20 = vector.load %arg2[%c7, %c0_23, %c0_24] : memref<9x8x128xf32, #tpu.memory_space<vmem>>, vector<1x8x128xf32>
    %21 = vector.shape_cast %20 : vector<1x8x128xf32> to vector<8x128xf32>
    %c8 = arith.constant 8 : index
    %c0_25 = arith.constant 0 : index
    %c0_26 = arith.constant 0 : index
    %22 = vector.load %arg2[%c8, %c0_25, %c0_26] : memref<9x8x128xf32, #tpu.memory_space<vmem>>, vector<1x8x128xf32>
    %23 = vector.shape_cast %22 : vector<1x8x128xf32> to vector<8x128xf32>
    %24 = math.cos %7 : vector<8x128xf32>
    %25 = math.sin %7 : vector<8x128xf32>
    %26 = math.cos %9 : vector<8x128xf32>
    %27 = math.sin %9 : vector<8x128xf32>
    %28 = math.cos %11 : vector<8x128xf32>
    %29 = math.sin %11 : vector<8x128xf32>
    %cst = arith.constant 1.000000e+00 : f32
    %30 = vector.broadcast %cst : f32 to vector<8x128xf32>
    %31 = arith.divf %30, %26 : vector<8x128xf32>
    %32 = arith.mulf %27, %31 : vector<8x128xf32>
    %33 = arith.mulf %15, %25 : vector<8x128xf32>
    %34 = arith.mulf %17, %24 : vector<8x128xf32>
    %35 = arith.addf %33, %34 : vector<8x128xf32>
    %36 = arith.mulf %35, %32 : vector<8x128xf32>
    %37 = arith.addf %13, %36 : vector<8x128xf32>
    %38 = arith.mulf %15, %24 : vector<8x128xf32>
    %39 = arith.mulf %17, %25 : vector<8x128xf32>
    %40 = arith.subf %38, %39 : vector<8x128xf32>
    %41 = arith.mulf %35, %31 : vector<8x128xf32>
    %cst_27 = arith.constant -0.00999999977 : f32
    %42 = vector.broadcast %cst_27 : f32 to vector<8x128xf32>
    %43 = arith.mulf %42, %13 : vector<8x128xf32>
    %44 = arith.mulf %15, %17 : vector<8x128xf32>
    %cst_28 = arith.constant 3.000000e-02 : f32
    %45 = vector.broadcast %cst_28 : f32 to vector<8x128xf32>
    %46 = arith.mulf %44, %45 : vector<8x128xf32>
    %47 = arith.subf %43, %46 : vector<8x128xf32>
    %cst_29 = arith.constant 0.833333313 : f32
    %48 = vector.broadcast %cst_29 : f32 to vector<8x128xf32>
    %49 = arith.mulf %5, %48 : vector<8x128xf32>
    %50 = arith.subf %1, %49 : vector<8x128xf32>
    %cst_30 = arith.constant 1.250000e-01 : f32
    %51 = vector.broadcast %cst_30 : f32 to vector<8x128xf32>
    %52 = arith.mulf %51, %50 : vector<8x128xf32>
    %53 = arith.addf %47, %52 : vector<8x128xf32>
    %cst_31 = arith.constant 33.3333321 : f32
    %54 = vector.broadcast %cst_31 : f32 to vector<8x128xf32>
    %55 = arith.mulf %54, %53 : vector<8x128xf32>
    %cst_32 = arith.constant -0.00999999977 : f32
    %56 = vector.broadcast %cst_32 : f32 to vector<8x128xf32>
    %57 = arith.mulf %56, %13 : vector<8x128xf32>
    %58 = arith.addf %57, %3 : vector<8x128xf32>
    %cst_33 = arith.constant 33.3333321 : f32
    %59 = vector.broadcast %cst_33 : f32 to vector<8x128xf32>
    %60 = arith.mulf %59, %58 : vector<8x128xf32>
    %cst_34 = arith.constant -0.00999999977 : f32
    %61 = vector.broadcast %cst_34 : f32 to vector<8x128xf32>
    %62 = arith.mulf %61, %17 : vector<8x128xf32>
    %63 = arith.addf %62, %5 : vector<8x128xf32>
    %cst_35 = arith.constant 33.3333321 : f32
    %64 = vector.broadcast %cst_35 : f32 to vector<8x128xf32>
    %65 = arith.mulf %64, %63 : vector<8x128xf32>
    %66 = arith.mulf %24, %27 : vector<8x128xf32>
    %67 = arith.mulf %66, %28 : vector<8x128xf32>
    %68 = arith.mulf %25, %29 : vector<8x128xf32>
    %69 = arith.addf %67, %68 : vector<8x128xf32>
    %cst_36 = arith.constant 0.833333313 : f32
    %70 = vector.broadcast %cst_36 : f32 to vector<8x128xf32>
    %71 = arith.mulf %70, %69 : vector<8x128xf32>
    %72 = arith.mulf %71, %1 : vector<8x128xf32>
    %cst_37 = arith.constant 0.0166666675 : f32
    %73 = vector.broadcast %cst_37 : f32 to vector<8x128xf32>
    %74 = arith.mulf %73, %19 : vector<8x128xf32>
    %75 = arith.subf %72, %74 : vector<8x128xf32>
    %76 = arith.mulf %24, %27 : vector<8x128xf32>
    %77 = arith.mulf %76, %29 : vector<8x128xf32>
    %78 = arith.mulf %25, %28 : vector<8x128xf32>
    %79 = arith.subf %77, %78 : vector<8x128xf32>
    %cst_38 = arith.constant 0.833333313 : f32
    %80 = vector.broadcast %cst_38 : f32 to vector<8x128xf32>
    %81 = arith.mulf %80, %79 : vector<8x128xf32>
    %82 = arith.mulf %81, %1 : vector<8x128xf32>
    %cst_39 = arith.constant 0.0166666675 : f32
    %83 = vector.broadcast %cst_39 : f32 to vector<8x128xf32>
    %84 = arith.mulf %83, %21 : vector<8x128xf32>
    %85 = arith.subf %82, %84 : vector<8x128xf32>
    %86 = arith.mulf %1, %24 : vector<8x128xf32>
    %87 = arith.mulf %86, %26 : vector<8x128xf32>
    %cst_40 = arith.constant 2.000000e-02 : f32
    %88 = vector.broadcast %cst_40 : f32 to vector<8x128xf32>
    %89 = arith.mulf %88, %23 : vector<8x128xf32>
    %90 = arith.subf %87, %89 : vector<8x128xf32>
    %cst_41 = arith.constant 1.177200e+01 : f32
    %91 = vector.broadcast %cst_41 : f32 to vector<8x128xf32>
    %92 = arith.subf %90, %91 : vector<8x128xf32>
    %cst_42 = arith.constant 0.833333313 : f32
    %93 = vector.broadcast %cst_42 : f32 to vector<8x128xf32>
    %94 = arith.mulf %93, %92 : vector<8x128xf32>
    %cst_43 = arith.constant 2.000000e-02 : f32
    %95 = vector.broadcast %cst_43 : f32 to vector<8x128xf32>
    %96 = arith.mulf %95, %37 : vector<8x128xf32>
    %97 = arith.addf %7, %96 : vector<8x128xf32>
    %c0_44 = arith.constant 0 : index
    %c0_45 = arith.constant 0 : index
    %c0_46 = arith.constant 0 : index
    %98 = vector.load %arg3[%c0_44, %c0_45, %c0_46] : memref<9x8x128xf32, #tpu.memory_space<vmem>>, vector<1x8x128xf32>
    %99 = vector.shape_cast %98 : vector<1x8x128xf32> to vector<8x128xf32>
    %100 = vector.shape_cast %97 : vector<8x128xf32> to vector<1x8x128xf32>
    tpu.vector_store %arg3[%c0_44, %c0_45, %c0_46], %100 {strides = array<i32>} : memref<9x8x128xf32, #tpu.memory_space<vmem>>, vector<1x8x128xf32>,
    %cst_47 = arith.constant 2.000000e-02 : f32
    %101 = vector.broadcast %cst_47 : f32 to vector<8x128xf32>
    %102 = arith.mulf %101, %40 : vector<8x128xf32>
    %103 = arith.addf %9, %102 : vector<8x128xf32>
    %c1_48 = arith.constant 1 : index
    %c0_49 = arith.constant 0 : index
    %c0_50 = arith.constant 0 : index
    %104 = vector.load %arg3[%c1_48, %c0_49, %c0_50] : memref<9x8x128xf32, #tpu.memory_space<vmem>>, vector<1x8x128xf32>
    %105 = vector.shape_cast %104 : vector<1x8x128xf32> to vector<8x128xf32>
    %106 = vector.shape_cast %103 : vector<8x128xf32> to vector<1x8x128xf32>
    tpu.vector_store %arg3[%c1_48, %c0_49, %c0_50], %106 {strides = array<i32>} : memref<9x8x128xf32, #tpu.memory_space<vmem>>, vector<1x8x128xf32>,
    %cst_51 = arith.constant 2.000000e-02 : f32
    %107 = vector.broadcast %cst_51 : f32 to vector<8x128xf32>
    %108 = arith.mulf %107, %41 : vector<8x128xf32>
    %109 = arith.addf %11, %108 : vector<8x128xf32>
    %c2_52 = arith.constant 2 : index
    %c0_53 = arith.constant 0 : index
    %c0_54 = arith.constant 0 : index
    %110 = vector.load %arg3[%c2_52, %c0_53, %c0_54] : memref<9x8x128xf32, #tpu.memory_space<vmem>>, vector<1x8x128xf32>
    %111 = vector.shape_cast %110 : vector<1x8x128xf32> to vector<8x128xf32>
    %112 = vector.shape_cast %109 : vector<8x128xf32> to vector<1x8x128xf32>
    tpu.vector_store %arg3[%c2_52, %c0_53, %c0_54], %112 {strides = array<i32>} : memref<9x8x128xf32, #tpu.memory_space<vmem>>, vector<1x8x128xf32>,
    %cst_55 = arith.constant 2.000000e-02 : f32
    %113 = vector.broadcast %cst_55 : f32 to vector<8x128xf32>
    %114 = arith.mulf %113, %55 : vector<8x128xf32>
    %115 = arith.addf %13, %114 : vector<8x128xf32>
    %c3_56 = arith.constant 3 : index
    %c0_57 = arith.constant 0 : index
    %c0_58 = arith.constant 0 : index
    %116 = vector.load %arg3[%c3_56, %c0_57, %c0_58] : memref<9x8x128xf32, #tpu.memory_space<vmem>>, vector<1x8x128xf32>
    %117 = vector.shape_cast %116 : vector<1x8x128xf32> to vector<8x128xf32>
    %118 = vector.shape_cast %115 : vector<8x128xf32> to vector<1x8x128xf32>
    tpu.vector_store %arg3[%c3_56, %c0_57, %c0_58], %118 {strides = array<i32>} : memref<9x8x128xf32, #tpu.memory_space<vmem>>, vector<1x8x128xf32>,
    %cst_59 = arith.constant 2.000000e-02 : f32
    %119 = vector.broadcast %cst_59 : f32 to vector<8x128xf32>
    %120 = arith.mulf %119, %60 : vector<8x128xf32>
    %121 = arith.addf %15, %120 : vector<8x128xf32>
    %c4_60 = arith.constant 4 : index
    %c0_61 = arith.constant 0 : index
    %c0_62 = arith.constant 0 : index
    %122 = vector.load %arg3[%c4_60, %c0_61, %c0_62] : memref<9x8x128xf32, #tpu.memory_space<vmem>>, vector<1x8x128xf32>
    %123 = vector.shape_cast %122 : vector<1x8x128xf32> to vector<8x128xf32>
    %124 = vector.shape_cast %121 : vector<8x128xf32> to vector<1x8x128xf32>
    tpu.vector_store %arg3[%c4_60, %c0_61, %c0_62], %124 {strides = array<i32>} : memref<9x8x128xf32, #tpu.memory_space<vmem>>, vector<1x8x128xf32>,
    %cst_63 = arith.constant 2.000000e-02 : f32
    %125 = vector.broadcast %cst_63 : f32 to vector<8x128xf32>
    %126 = arith.mulf %125, %65 : vector<8x128xf32>
    %127 = arith.addf %17, %126 : vector<8x128xf32>
    %c5_64 = arith.constant 5 : index
    %c0_65 = arith.constant 0 : index
    %c0_66 = arith.constant 0 : index
    %128 = vector.load %arg3[%c5_64, %c0_65, %c0_66] : memref<9x8x128xf32, #tpu.memory_space<vmem>>, vector<1x8x128xf32>
    %129 = vector.shape_cast %128 : vector<1x8x128xf32> to vector<8x128xf32>
    %130 = vector.shape_cast %127 : vector<8x128xf32> to vector<1x8x128xf32>
    tpu.vector_store %arg3[%c5_64, %c0_65, %c0_66], %130 {strides = array<i32>} : memref<9x8x128xf32, #tpu.memory_space<vmem>>, vector<1x8x128xf32>,
    %cst_67 = arith.constant 2.000000e-02 : f32
    %131 = vector.broadcast %cst_67 : f32 to vector<8x128xf32>
    %132 = arith.mulf %131, %75 : vector<8x128xf32>
    %133 = arith.addf %19, %132 : vector<8x128xf32>
    %c6_68 = arith.constant 6 : index
    %c0_69 = arith.constant 0 : index
    %c0_70 = arith.constant 0 : index
    %134 = vector.load %arg3[%c6_68, %c0_69, %c0_70] : memref<9x8x128xf32, #tpu.memory_space<vmem>>, vector<1x8x128xf32>
    %135 = vector.shape_cast %134 : vector<1x8x128xf32> to vector<8x128xf32>
    %136 = vector.shape_cast %133 : vector<8x128xf32> to vector<1x8x128xf32>
    tpu.vector_store %arg3[%c6_68, %c0_69, %c0_70], %136 {strides = array<i32>} : memref<9x8x128xf32, #tpu.memory_space<vmem>>, vector<1x8x128xf32>,
    %cst_71 = arith.constant 2.000000e-02 : f32
    %137 = vector.broadcast %cst_71 : f32 to vector<8x128xf32>
    %138 = arith.mulf %137, %85 : vector<8x128xf32>
    %139 = arith.addf %21, %138 : vector<8x128xf32>
    %c7_72 = arith.constant 7 : index
    %c0_73 = arith.constant 0 : index
    %c0_74 = arith.constant 0 : index
    %140 = vector.load %arg3[%c7_72, %c0_73, %c0_74] : memref<9x8x128xf32, #tpu.memory_space<vmem>>, vector<1x8x128xf32>
    %141 = vector.shape_cast %140 : vector<1x8x128xf32> to vector<8x128xf32>
    %142 = vector.shape_cast %139 : vector<8x128xf32> to vector<1x8x128xf32>
    tpu.vector_store %arg3[%c7_72, %c0_73, %c0_74], %142 {strides = array<i32>} : memref<9x8x128xf32, #tpu.memory_space<vmem>>, vector<1x8x128xf32>,
    %cst_75 = arith.constant 2.000000e-02 : f32
    %143 = vector.broadcast %cst_75 : f32 to vector<8x128xf32>
    %144 = arith.mulf %143, %94 : vector<8x128xf32>
    %145 = arith.addf %23, %144 : vector<8x128xf32>
    %c8_76 = arith.constant 8 : index
    %c0_77 = arith.constant 0 : index
    %c0_78 = arith.constant 0 : index
    %146 = vector.load %arg3[%c8_76, %c0_77, %c0_78] : memref<9x8x128xf32, #tpu.memory_space<vmem>>, vector<1x8x128xf32>
    %147 = vector.shape_cast %146 : vector<1x8x128xf32> to vector<8x128xf32>
    %148 = vector.shape_cast %145 : vector<8x128xf32> to vector<1x8x128xf32>
    tpu.vector_store %arg3[%c8_76, %c0_77, %c0_78], %148 {strides = array<i32>} : memref<9x8x128xf32, #tpu.memory_space<vmem>>, vector<1x8x128xf32>,
    return
  }
  func.func @transform_0(%arg0: i32) -> (i32, i32, i32) {
    %c0_i32 = arith.constant 0 : i32
    %c0_i32_0 = arith.constant 0 : i32
    %c0_i32_1 = arith.constant 0 : i32
    return %c0_i32, %arg0, %c0_i32_0 : i32, i32, i32
  }
  func.func @transform_1(%arg0: i32) -> (i32, i32, i32) {
    %c0_i32 = arith.constant 0 : i32
    %c0_i32_0 = arith.constant 0 : i32
    %c0_i32_1 = arith.constant 0 : i32
    return %c0_i32, %arg0, %c0_i32_0 : i32, i32, i32
  }
  func.func @transform_2(%arg0: i32) -> (i32, i32, i32) {
    %c0_i32 = arith.constant 0 : i32
    %c0_i32_0 = arith.constant 0 : i32
    %c0_i32_1 = arith.constant 0 : i32
    return %c0_i32, %arg0, %c0_i32_0 : i32, i32, i32
  }
}

</mosaic_0001>

<llo_original>
// kernel: tpu_custom_call.1
$region0: #{tpu_custom_call.1}
  #allocation0 [shape = 'u32[]', space=smem, size = 0x4, offset = 0x4, fixed_abs, tag = 'smem constant byte address 0x4 - core index']
  #allocation1 [shape = 'u32[144,128]{1,0:T(1,128)}', space=vmem, size = 0x12000, scoped, tag = 'internal scratch']
  %s0 = inlined_call_operand.hbm [shape: f32[3,8,128], index: 0, kind: input, shape index: {}]
  %s1 = inlined_call_operand.hbm [shape: f32[9,8,128], index: 1, kind: input, shape index: {}]
  %s2 = inlined_call_operand.hbm [shape: f32[9,8,128], index: 2, kind: output, shape index: {}]
  %s3 = sld [smem:[#allocation0]]
  $region26: #{tpu_custom_call.1} parent=0
    _
  %s5 = ssub.s32 1, %s3
  %s6 = scalar_select 0, %s5, %s3
  $region1: #{tpu_custom_call.1} parent=0
    #allocation2 [shape = 'u8[12288]{0}', space=vmem, size = 0x3000, scoped, tag = 'input window, operand 0, single buffered']
    #allocation3 [shape = 's32[1]{0}', space=sflag, size = 0x4, scoped, tag = 'scoped memory for tpu_custom_call.1']
    #allocation4 [shape = 's32[1]{0}', space=sflag, size = 0x4, scoped, tag = 'scoped memory for tpu_custom_call.1']
    #allocation5 [shape = 'u8[36864]{0}', space=vmem, size = 0x9000, scoped, tag = 'input window, operand 1, single buffered']
    #allocation6 [shape = 's32[1]{0}', space=sflag, size = 0x4, scoped, tag = 'scoped memory for tpu_custom_call.1']
    #allocation7 [shape = 'u8[36864]{0}', space=vmem, size = 0x9000, scoped, tag = 'output window, operand 0, single buffered']
    %7 = vsyncpa [#allocation3], 0
    %8 = vsyncpa [#allocation6], 0
    %9 = vsyncpa [#allocation4], 0
    // Predicated region
    $region2: #{tpu_custom_call.1} parent=1 // pred_check
      _
    $region3: #{tpu_custom_call.1} parent=1 // pred_check_branch
      %11 = sbr.rel (0) target = $region5
    $region4: #{tpu_custom_call.1} parent=1 // pred_region
      %s13 = ssub.s32 384, 384
      %14 = vsyncadd [#allocation3], %s13
      %s15 = smul.addr %s6, 128
      %s16 = scalar_lea.hbm %s0, %s15
      %s17 = sshll.u32 [#allocation2], 4
      %s18 = int_to_ptr.vmem [resolvable:$true] %s17
      %23 = dma.hbm_to_vmem [thread:$0]  %s16, 384, %s18, [#allocation3], 128, 128, 8
    $region5: #{tpu_custom_call.1} parent=1 // pred_fallthru
      _
    // Predicated region
    $region6: #{tpu_custom_call.1} parent=1 // pred_check
      _
    $region7: #{tpu_custom_call.1} parent=1 // pred_check_branch
      %25 = sbr.rel (0) target = $region9
    $region8: #{tpu_custom_call.1} parent=1 // pred_region
      %s27 = ssub.s32 1152, 1152
      %28 = vsyncadd [#allocation6], %s27
      %s29 = smul.addr %s6, 128
      %s30 = scalar_lea.hbm %s1, %s29
      %s31 = sshll.u32 [#allocation5], 4
      %s32 = int_to_ptr.vmem [resolvable:$true] %s31
      %37 = dma.hbm_to_vmem [thread:$0]  %s30, 1152, %s32, [#allocation6], 128, 128, 8
    $region9: #{tpu_custom_call.1} parent=1 // pred_fallthru
      _
    // Predicated region
    $region10: #{tpu_custom_call.1} parent=1 // pred_check
      _
    $region11: #{tpu_custom_call.1} parent=1 // pred_check_branch
      %39 = sbr.rel (0) target = $region13
    $region12: #{tpu_custom_call.1} parent=1 // pred_region
      %40 = dma.done [#allocation3], 384
    $region13: #{tpu_custom_call.1} parent=1 // pred_fallthru
      _
    // Predicated region
    $region14: #{tpu_custom_call.1} parent=1 // pred_check
      _
    $region15: #{tpu_custom_call.1} parent=1 // pred_check_branch
      %42 = sbr.rel (0) target = $region17
    $region16: #{tpu_custom_call.1} parent=1 // pred_region
      %43 = dma.done [#allocation6], 1152
    $region17: #{tpu_custom_call.1} parent=1 // pred_fallthru
      _
    %v44 = vld [vmem:[#allocation2] sm:$0xff]
    %s45 = scalar_lea.vmem [#allocation2], 8
    %v46 = vld [vmem:[%s45] sm:$0xff]
    %s47 = scalar_lea.vmem [#allocation2], 16
    %v48 = vld [vmem:[%s47] sm:$0xff]
    %v49 = vld [vmem:[#allocation5] sm:$0xff]
    %s50 = scalar_lea.vmem [#allocation5], 8
    %v51 = vld [vmem:[%s50] sm:$0xff]
    %s52 = scalar_lea.vmem [#allocation5], 16
    %v53 = vld [vmem:[%s52] sm:$0xff]
    %s54 = scalar_lea.vmem [#allocation5], 24
    %v55 = vld [vmem:[%s54] sm:$0xff]
    %s56 = scalar_lea.vmem [#allocation5], 32
    %v57 = vld [vmem:[%s56] sm:$0xff]
    %s58 = scalar_lea.vmem [#allocation5], 40
    %v59 = vld [vmem:[%s58] sm:$0xff]
    %s60 = scalar_lea.vmem [#allocation5], 48
    %v61 = vld [vmem:[%s60] sm:$0xff]
    %s62 = scalar_lea.vmem [#allocation5], 56
    %v63 = vld [vmem:[%s62] sm:$0xff]
    %s64 = scalar_lea.vmem [#allocation5], 64
    %v65 = vld [vmem:[%s64] sm:$0xff]
    %v66 = vand.u32 2147483647, %v49
    %vm67 = vcmp.le.f32.partialorder %v66, 0.7853982
    %vm68 = vcmp.lt.s32.totalorder %v49, 0
    %v69 = vand.u32 %v49, 2139095040
    %v70 = vshrl.u32 %v69, 23
    %v71 = vsub.s32 %v70, 127
    %v72 = vand.u32 2147483647, %v49
    %v73 = vand.u32 %v72, 8388607
    %v74 = vor.u32 %v73, 8388608
    %v75 = vsub.s32 0, %v74
    %v76 = vadd.s32 %v71, 1
    %vm77 = vcmp.gt.s32.totalorder %v76, 0
    %v78 = vsel %vm77, %v76, 0
    %v79 = vshrl.u32 %v78, 5
    %v80 = vand.u32 %v78, 31
    %v81 = vsub.s32 32, %v80
    %v82 = vshrl.u32 683565275, %v81
    %v83 = vshll.u32 683565275, %v80
    %v84 = vshrl.u32 2475754826, %v81
    %v85 = vor.u32 %v83, %v84
    %v86 = vshll.u32 2475754826, %v80
    %v87 = vshrl.u32 2131351028, %v81
    %v88 = vor.u32 %v86, %v87
    %v89 = vshll.u32 2131351028, %v80
    %v90 = vshrl.u32 2102212464, %v81
    %v91 = vor.u32 %v89, %v90
    %v92 = vshll.u32 2102212464, %v80
    %v93 = vshrl.u32 920167782, %v81
    %v94 = vor.u32 %v92, %v93
    %v95 = vshll.u32 920167782, %v80
    %v96 = vshrl.u32 1326507024, %v81
    %v97 = vor.u32 %v95, %v96
    %vm98 = vcmp.lt.s32.totalorder %v79, 1
    %vm99 = vcmp.lt.s32.totalorder %v79, 2
    %vm100 = vcmp.lt.s32.totalorder %v79, 3
    %vm101 = vcmp.lt.s32.totalorder %v79, 4
    %v102 = vsel %vm98, %v82, %v85
    %v103 = vsel %vm101, %v91, 2102212464
    %v104 = vsel %vm100, %v88, %v103
    %v105 = vsel %vm99, %v102, %v104
    %v106 = vsel %vm98, %v85, %v88
    %v107 = vsel %vm101, %v94, 920167782
    %v108 = vsel %vm100, %v91, %v107
    %v109 = vsel %vm99, %v106, %v108
    %v110 = vsel %vm98, %v88, %v91
    %v111 = vsel %vm101, %v97, 1326507024
    %v112 = vsel %vm100, %v94, %v111
    %v113 = vsel %vm99, %v110, %v112
    %v114 = vshll.u32 %v74, 8
    %v115 = vmul.u32.u64.compose %v114, %v113
    %v116 = vextract.low.u32 %v115
    %v117 = vextract.high.u32 %v115
    %v118 = vmul.u32.u64.compose %v114, %v109
    %v119 = vextract.low.u32 %v118
    %v120 = vextract.high.u32 %v118
    %v121 = vmul.u32 %v114, %v105
    %v122 = vadd.s32 %v117, %v119
    %vm123 = vc.u32 %v117, %v119
    %v124 = vadd.s32 %v120, 1
    %v125 = vsel %vm123, %v124, %v120
    %v126 = vadd.s32 %v121, %v125
    %v127 = vadd.s32 %v126, 536870912
    %v128 = vshrl.u32 %v127, 30
    %v129 = vshll.u32 %v128, 30
    %v130 = vsub.s32 %v126, %v129
    %vm131 = vcmp.lt.s32.totalorder %v130, 0
    %v132 = vsub.s32 0, %v130
    %v133 = vsel %vm131, %v132, %v130
    %v134 = vclz %v133
    %v135 = vsub.s32 %v134, 2
    %vm136 = vcmp.gt.s32.totalorder 0, %v135
    %v137 = vsel %vm136, 0, %v135
    %v138 = vsub.s32 32, %v137
    %v139 = vshll.u32 %v130, %v137
    %v140 = vshrl.u32 %v122, %v138
    %v141 = vor.u32 %v139, %v140
    %v142 = vsub.s32 4294967266, %v137
    %v143 = vadd.s32 %v142, 127
    %v144 = vshll.u32 %v143, 23
    %v145 = vor.u32 4788187, %v144
    %v146 = vand.u32 2147483647, %v145
    %v148 = vcvt.s32.f32 %v141
    %v149 = vmul.f32 %v148, %v146
    %v150 = vxor.u32 %v149, 2147483648
    %v151 = vsel %vm68, %v150, %v149
    %v152 = vsub.s32 4, %v128
    %v153 = vsel %vm68, %v152, %v128
    %v154 = vsel %vm67, %v49, %v151
    %v155 = vsel %vm67, 0, %v153
    %v156 = vcosq.f32.pop %v154
    %v157 = vsinq.f32.pop %v154
    %vm158 = vweird.f32 %v49
    %v159 = vand.u32 %v155, 3
    %vm160 = vcmp.lt.s32.totalorder %v159, 2
    %vm161 = vcmp.eq.s32.totalorder %v159, 0
    %v162 = vxor.u32 %v157, 2147483648
    %v163 = vsel %vm161, %v156, %v162
    %vm164 = vcmp.eq.s32.totalorder %v159, 2
    %v165 = vxor.u32 %v156, 2147483648
    %v166 = vsel %vm164, %v165, %v157
    %v167 = vsel %vm160, %v163, %v166
    %v168 = vsel %vm158, nan, %v167
    %v169 = vand.u32 2147483647, %v49
    %vm170 = vcmp.le.f32.partialorder %v169, 0.7853982
    %vm171 = vcmp.lt.s32.totalorder %v49, 0
    %v172 = vand.u32 %v49, 2139095040
    %v173 = vshrl.u32 %v172, 23
    %v174 = vsub.s32 %v173, 127
    %v175 = vand.u32 2147483647, %v49
    %v176 = vand.u32 %v175, 8388607
    %v177 = vor.u32 %v176, 8388608
    %v178 = vsub.s32 0, %v177
    %v179 = vadd.s32 %v174, 1
    %vm180 = vcmp.gt.s32.totalorder %v179, 0
    %v181 = vsel %vm180, %v179, 0
    %v182 = vshrl.u32 %v181, 5
    %v183 = vand.u32 %v181, 31
    %v184 = vsub.s32 32, %v183
    %v185 = vshrl.u32 683565275, %v184
    %v186 = vshll.u32 683565275, %v183
    %v187 = vshrl.u32 2475754826, %v184
    %v188 = vor.u32 %v186, %v187
    %v189 = vshll.u32 2475754826, %v183
    %v190 = vshrl.u32 2131351028, %v184
    %v191 = vor.u32 %v189, %v190
    %v192 = vshll.u32 2131351028, %v183
    %v193 = vshrl.u32 2102212464, %v184
    %v194 = vor.u32 %v192, %v193
    %v195 = vshll.u32 2102212464, %v183
    %v196 = vshrl.u32 920167782, %v184
    %v197 = vor.u32 %v195, %v196
    %v198 = vshll.u32 920167782, %v183
    %v199 = vshrl.u32 1326507024, %v184
    %v200 = vor.u32 %v198, %v199
    %vm201 = vcmp.lt.s32.totalorder %v182, 1
    %vm202 = vcmp.lt.s32.totalorder %v182, 2
    %vm203 = vcmp.lt.s32.totalorder %v182, 3
    %vm204 = vcmp.lt.s32.totalorder %v182, 4
    %v205 = vsel %vm201, %v185, %v188
    %v206 = vsel %vm204, %v194, 2102212464
    %v207 = vsel %vm203, %v191, %v206
    %v208 = vsel %vm202, %v205, %v207
    %v209 = vsel %vm201, %v188, %v191
    %v210 = vsel %vm204, %v197, 920167782
    %v211 = vsel %vm203, %v194, %v210
    %v212 = vsel %vm202, %v209, %v211
    %v213 = vsel %vm201, %v191, %v194
    %v214 = vsel %vm204, %v200, 1326507024
    %v215 = vsel %vm203, %v197, %v214
    %v216 = vsel %vm202, %v213, %v215
    %v217 = vshll.u32 %v177, 8
    %v218 = vmul.u32.u64.compose %v217, %v216
    %v219 = vextract.low.u32 %v218
    %v220 = vextract.high.u32 %v218
    %v221 = vmul.u32.u64.compose %v217, %v212
    %v222 = vextract.low.u32 %v221
    %v223 = vextract.high.u32 %v221
    %v224 = vmul.u32 %v217, %v208
    %v225 = vadd.s32 %v220, %v222
    %vm226 = vc.u32 %v220, %v222
    %v227 = vadd.s32 %v223, 1
    %v228 = vsel %vm226, %v227, %v223
    %v229 = vadd.s32 %v224, %v228
    %v230 = vadd.s32 %v229, 536870912
    %v231 = vshrl.u32 %v230, 30
    %v232 = vshll.u32 %v231, 30
    %v233 = vsub.s32 %v229, %v232
    %vm234 = vcmp.lt.s32.totalorder %v233, 0
    %v235 = vsub.s32 0, %v233
    %v236 = vsel %vm234, %v235, %v233
    %v237 = vclz %v236
    %v238 = vsub.s32 %v237, 2
    %vm239 = vcmp.gt.s32.totalorder 0, %v238
    %v240 = vsel %vm239, 0, %v238
    %v241 = vsub.s32 32, %v240
    %v242 = vshll.u32 %v233, %v240
    %v243 = vshrl.u32 %v225, %v241
    %v244 = vor.u32 %v242, %v243
    %v245 = vsub.s32 4294967266, %v240
    %v246 = vadd.s32 %v245, 127
    %v247 = vshll.u32 %v246, 23
    %v248 = vor.u32 4788187, %v247
    %v249 = vand.u32 2147483647, %v248
    %v251 = vcvt.s32.f32 %v244
    %v252 = vmul.f32 %v251, %v249
    %v253 = vxor.u32 %v252, 2147483648
    %v254 = vsel %vm171, %v253, %v252
    %v255 = vsub.s32 4, %v231
    %v256 = vsel %vm171, %v255, %v231
    %v257 = vsel %vm170, %v49, %v254
    %v258 = vsel %vm170, 0, %v256
    %v259 = vcosq.f32.pop %v257
    %v260 = vsinq.f32.pop %v257
    %vm261 = vweird.f32 %v49
    %v262 = vadd.s32 %v258, 3
    %v263 = vand.u32 %v262, 3
    %vm264 = vcmp.lt.s32.totalorder %v263, 2
    %vm265 = vcmp.eq.s32.totalorder %v263, 0
    %v266 = vxor.u32 %v260, 2147483648
    %v267 = vsel %vm265, %v259, %v266
    %vm268 = vcmp.eq.s32.totalorder %v263, 2
    %v269 = vxor.u32 %v259, 2147483648
    %v270 = vsel %vm268, %v269, %v260
    %v271 = vsel %vm264, %v267, %v270
    %v272 = vsel %vm261, nan, %v271
    %v273 = vand.u32 2147483647, %v51
    %vm274 = vcmp.le.f32.partialorder %v273, 0.7853982
    %vm275 = vcmp.lt.s32.totalorder %v51, 0
    %v276 = vand.u32 %v51, 2139095040
    %v277 = vshrl.u32 %v276, 23
    %v278 = vsub.s32 %v277, 127
    %v279 = vand.u32 2147483647, %v51
    %v280 = vand.u32 %v279, 8388607
    %v281 = vor.u32 %v280, 8388608
    %v282 = vsub.s32 0, %v281
    %v283 = vadd.s32 %v278, 1
    %vm284 = vcmp.gt.s32.totalorder %v283, 0
    %v285 = vsel %vm284, %v283, 0
    %v286 = vshrl.u32 %v285, 5
    %v287 = vand.u32 %v285, 31
    %v288 = vsub.s32 32, %v287
    %v289 = vshrl.u32 683565275, %v288
    %v290 = vshll.u32 683565275, %v287
    %v291 = vshrl.u32 2475754826, %v288
    %v292 = vor.u32 %v290, %v291
    %v293 = vshll.u32 2475754826, %v287
    %v294 = vshrl.u32 2131351028, %v288
    %v295 = vor.u32 %v293, %v294
    %v296 = vshll.u32 2131351028, %v287
    %v297 = vshrl.u32 2102212464, %v288
    %v298 = vor.u32 %v296, %v297
    %v299 = vshll.u32 2102212464, %v287
    %v300 = vshrl.u32 920167782, %v288
    %v301 = vor.u32 %v299, %v300
    %v302 = vshll.u32 920167782, %v287
    %v303 = vshrl.u32 1326507024, %v288
    %v304 = vor.u32 %v302, %v303
    %vm305 = vcmp.lt.s32.totalorder %v286, 1
    %vm306 = vcmp.lt.s32.totalorder %v286, 2
    %vm307 = vcmp.lt.s32.totalorder %v286, 3
    %vm308 = vcmp.lt.s32.totalorder %v286, 4
    %v309 = vsel %vm305, %v289, %v292
    %v310 = vsel %vm308, %v298, 2102212464
    %v311 = vsel %vm307, %v295, %v310
    %v312 = vsel %vm306, %v309, %v311
    %v313 = vsel %vm305, %v292, %v295
    %v314 = vsel %vm308, %v301, 920167782
    %v315 = vsel %vm307, %v298, %v314
    %v316 = vsel %vm306, %v313, %v315
    %v317 = vsel %vm305, %v295, %v298
    %v318 = vsel %vm308, %v304, 1326507024
    %v319 = vsel %vm307, %v301, %v318
    %v320 = vsel %vm306, %v317, %v319
    %v321 = vshll.u32 %v281, 8
    %v322 = vmul.u32.u64.compose %v321, %v320
    %v323 = vextract.low.u32 %v322
    %v324 = vextract.high.u32 %v322
    %v325 = vmul.u32.u64.compose %v321, %v316
    %v326 = vextract.low.u32 %v325
    %v327 = vextract.high.u32 %v325
    %v328 = vmul.u32 %v321, %v312
    %v329 = vadd.s32 %v324, %v326
    %vm330 = vc.u32 %v324, %v326
    %v331 = vadd.s32 %v327, 1
    %v332 = vsel %vm330, %v331, %v327
    %v333 = vadd.s32 %v328, %v332
    %v334 = vadd.s32 %v333, 536870912
    %v335 = vshrl.u32 %v334, 30
    %v336 = vshll.u32 %v335, 30
    %v337 = vsub.s32 %v333, %v336
    %vm338 = vcmp.lt.s32.totalorder %v337, 0
    %v339 = vsub.s32 0, %v337
    %v340 = vsel %vm338, %v339, %v337
    %v341 = vclz %v340
    %v342 = vsub.s32 %v341, 2
    %vm343 = vcmp.gt.s32.totalorder 0, %v342
    %v344 = vsel %vm343, 0, %v342
    %v345 = vsub.s32 32, %v344
    %v346 = vshll.u32 %v337, %v344
    %v347 = vshrl.u32 %v329, %v345
    %v348 = vor.u32 %v346, %v347
    %v349 = vsub.s32 4294967266, %v344
    %v350 = vadd.s32 %v349, 127
    %v351 = vshll.u32 %v350, 23
    %v352 = vor.u32 4788187, %v351
    %v353 = vand.u32 2147483647, %v352
    %v355 = vcvt.s32.f32 %v348
    %v356 = vmul.f32 %v355, %v353
    %v357 = vxor.u32 %v356, 2147483648
    %v358 = vsel %vm275, %v357, %v356
    %v359 = vsub.s32 4, %v335
    %v360 = vsel %vm275, %v359, %v335
    %v361 = vsel %vm274, %v51, %v358
    %v362 = vsel %vm274, 0, %v360
    %v363 = vcosq.f32.pop %v361
    %v364 = vsinq.f32.pop %v361
    %vm365 = vweird.f32 %v51
    %v366 = vand.u32 %v362, 3
    %vm367 = vcmp.lt.s32.totalorder %v366, 2
    %vm368 = vcmp.eq.s32.totalorder %v366, 0
    %v369 = vxor.u32 %v364, 2147483648
    %v370 = vsel %vm368, %v363, %v369
    %vm371 = vcmp.eq.s32.totalorder %v366, 2
    %v372 = vxor.u32 %v363, 2147483648
    %v373 = vsel %vm371, %v372, %v364
    %v374 = vsel %vm367, %v370, %v373
    %v375 = vsel %vm365, nan, %v374
    %v376 = vand.u32 2147483647, %v51
    %vm377 = vcmp.le.f32.partialorder %v376, 0.7853982
    %vm378 = vcmp.lt.s32.totalorder %v51, 0
    %v379 = vand.u32 %v51, 2139095040
    %v380 = vshrl.u32 %v379, 23
    %v381 = vsub.s32 %v380, 127
    %v382 = vand.u32 2147483647, %v51
    %v383 = vand.u32 %v382, 8388607
    %v384 = vor.u32 %v383, 8388608
    %v385 = vsub.s32 0, %v384
    %v386 = vadd.s32 %v381, 1
    %vm387 = vcmp.gt.s32.totalorder %v386, 0
    %v388 = vsel %vm387, %v386, 0
    %v389 = vshrl.u32 %v388, 5
    %v390 = vand.u32 %v388, 31
    %v391 = vsub.s32 32, %v390
    %v392 = vshrl.u32 683565275, %v391
    %v393 = vshll.u32 683565275, %v390
    %v394 = vshrl.u32 2475754826, %v391
    %v395 = vor.u32 %v393, %v394
    %v396 = vshll.u32 2475754826, %v390
    %v397 = vshrl.u32 2131351028, %v391
    %v398 = vor.u32 %v396, %v397
    %v399 = vshll.u32 2131351028, %v390
    %v400 = vshrl.u32 2102212464, %v391
    %v401 = vor.u32 %v399, %v400
    %v402 = vshll.u32 2102212464, %v390
    %v403 = vshrl.u32 920167782, %v391
    %v404 = vor.u32 %v402, %v403
    %v405 = vshll.u32 920167782, %v390
    %v406 = vshrl.u32 1326507024, %v391
    %v407 = vor.u32 %v405, %v406
    %vm408 = vcmp.lt.s32.totalorder %v389, 1
    %vm409 = vcmp.lt.s32.totalorder %v389, 2
    %vm410 = vcmp.lt.s32.totalorder %v389, 3
    %vm411 = vcmp.lt.s32.totalorder %v389, 4
    %v412 = vsel %vm408, %v392, %v395
    %v413 = vsel %vm411, %v401, 2102212464
    %v414 = vsel %vm410, %v398, %v413
    %v415 = vsel %vm409, %v412, %v414
    %v416 = vsel %vm408, %v395, %v398
    %v417 = vsel %vm411, %v404, 920167782
    %v418 = vsel %vm410, %v401, %v417
    %v419 = vsel %vm409, %v416, %v418
    %v420 = vsel %vm408, %v398, %v401
    %v421 = vsel %vm411, %v407, 1326507024
    %v422 = vsel %vm410, %v404, %v421
    %v423 = vsel %vm409, %v420, %v422
    %v424 = vshll.u32 %v384, 8
    %v425 = vmul.u32.u64.compose %v424, %v423
    %v426 = vextract.low.u32 %v425
    %v427 = vextract.high.u32 %v425
    %v428 = vmul.u32.u64.compose %v424, %v419
    %v429 = vextract.low.u32 %v428
    %v430 = vextract.high.u32 %v428
    %v431 = vmul.u32 %v424, %v415
    %v432 = vadd.s32 %v427, %v429
    %vm433 = vc.u32 %v427, %v429
    %v434 = vadd.s32 %v430, 1
    %v435 = vsel %vm433, %v434, %v430
    %v436 = vadd.s32 %v431, %v435
    %v437 = vadd.s32 %v436, 536870912
    %v438 = vshrl.u32 %v437, 30
    %v439 = vshll.u32 %v438, 30
    %v440 = vsub.s32 %v436, %v439
    %vm441 = vcmp.lt.s32.totalorder %v440, 0
    %v442 = vsub.s32 0, %v440
    %v443 = vsel %vm441, %v442, %v440
    %v444 = vclz %v443
    %v445 = vsub.s32 %v444, 2
    %vm446 = vcmp.gt.s32.totalorder 0, %v445
    %v447 = vsel %vm446, 0, %v445
    %v448 = vsub.s32 32, %v447
    %v449 = vshll.u32 %v440, %v447
    %v450 = vshrl.u32 %v432, %v448
    %v451 = vor.u32 %v449, %v450
    %v452 = vsub.s32 4294967266, %v447
    %v453 = vadd.s32 %v452, 127
    %v454 = vshll.u32 %v453, 23
    %v455 = vor.u32 4788187, %v454
    %v456 = vand.u32 2147483647, %v455
    %v458 = vcvt.s32.f32 %v451
    %v459 = vmul.f32 %v458, %v456
    %v460 = vxor.u32 %v459, 2147483648
    %v461 = vsel %vm378, %v460, %v459
    %v462 = vsub.s32 4, %v438
    %v463 = vsel %vm378, %v462, %v438
    %v464 = vsel %vm377, %v51, %v461
    %v465 = vsel %vm377, 0, %v463
    %v466 = vcosq.f32.pop %v464
    %v467 = vsinq.f32.pop %v464
    %vm468 = vweird.f32 %v51
    %v469 = vadd.s32 %v465, 3
    %v470 = vand.u32 %v469, 3
    %vm471 = vcmp.lt.s32.totalorder %v470, 2
    %vm472 = vcmp.eq.s32.totalorder %v470, 0
    %v473 = vxor.u32 %v467, 2147483648
    %v474 = vsel %vm472, %v466, %v473
    %vm475 = vcmp.eq.s32.totalorder %v470, 2
    %v476 = vxor.u32 %v466, 2147483648
    %v477 = vsel %vm475, %v476, %v467
    %v478 = vsel %vm471, %v474, %v477
    %v479 = vsel %vm468, nan, %v478
    %v480 = vand.u32 2147483647, %v53
    %vm481 = vcmp.le.f32.partialorder %v480, 0.7853982
    %vm482 = vcmp.lt.s32.totalorder %v53, 0
    %v483 = vand.u32 %v53, 2139095040
    %v484 = vshrl.u32 %v483, 23
    %v485 = vsub.s32 %v484, 127
    %v486 = vand.u32 2147483647, %v53
    %v487 = vand.u32 %v486, 8388607
    %v488 = vor.u32 %v487, 8388608
    %v489 = vsub.s32 0, %v488
    %v490 = vadd.s32 %v485, 1
    %vm491 = vcmp.gt.s32.totalorder %v490, 0
    %v492 = vsel %vm491, %v490, 0
    %v493 = vshrl.u32 %v492, 5
    %v494 = vand.u32 %v492, 31
    %v495 = vsub.s32 32, %v494
    %v496 = vshrl.u32 683565275, %v495
    %v497 = vshll.u32 683565275, %v494
    %v498 = vshrl.u32 2475754826, %v495
    %v499 = vor.u32 %v497, %v498
    %v500 = vshll.u32 2475754826, %v494
    %v501 = vshrl.u32 2131351028, %v495
    %v502 = vor.u32 %v500, %v501
    %v503 = vshll.u32 2131351028, %v494
    %v504 = vshrl.u32 2102212464, %v495
    %v505 = vor.u32 %v503, %v504
    %v506 = vshll.u32 2102212464, %v494
    %v507 = vshrl.u32 920167782, %v495
    %v508 = vor.u32 %v506, %v507
    %v509 = vshll.u32 920167782, %v494
    %v510 = vshrl.u32 1326507024, %v495
    %v511 = vor.u32 %v509, %v510
    %vm512 = vcmp.lt.s32.totalorder %v493, 1
    %vm513 = vcmp.lt.s32.totalorder %v493, 2
    %vm514 = vcmp.lt.s32.totalorder %v493, 3
    %vm515 = vcmp.lt.s32.totalorder %v493, 4
    %v516 = vsel %vm512, %v496, %v499
    %v517 = vsel %vm515, %v505, 2102212464
    %v518 = vsel %vm514, %v502, %v517
    %v519 = vsel %vm513, %v516, %v518
    %v520 = vsel %vm512, %v499, %v502
    %v521 = vsel %vm515, %v508, 920167782
    %v522 = vsel %vm514, %v505, %v521
    %v523 = vsel %vm513, %v520, %v522
    %v524 = vsel %vm512, %v502, %v505
    %v525 = vsel %vm515, %v511, 1326507024
    %v526 = vsel %vm514, %v508, %v525
    %v527 = vsel %vm513, %v524, %v526
    %v528 = vshll.u32 %v488, 8
    %v529 = vmul.u32.u64.compose %v528, %v527
    %v530 = vextract.low.u32 %v529
    %v531 = vextract.high.u32 %v529
    %v532 = vmul.u32.u64.compose %v528, %v523
    %v533 = vextract.low.u32 %v532
    %v534 = vextract.high.u32 %v532
    %v535 = vmul.u32 %v528, %v519
    %v536 = vadd.s32 %v531, %v533
    %vm537 = vc.u32 %v531, %v533
    %v538 = vadd.s32 %v534, 1
    %v539 = vsel %vm537, %v538, %v534
    %v540 = vadd.s32 %v535, %v539
    %v541 = vadd.s32 %v540, 536870912
    %v542 = vshrl.u32 %v541, 30
    %v543 = vshll.u32 %v542, 30
    %v544 = vsub.s32 %v540, %v543
    %vm545 = vcmp.lt.s32.totalorder %v544, 0
    %v546 = vsub.s32 0, %v544
    %v547 = vsel %vm545, %v546, %v544
    %v548 = vclz %v547
    %v549 = vsub.s32 %v548, 2
    %vm550 = vcmp.gt.s32.totalorder 0, %v549
    %v551 = vsel %vm550, 0, %v549
    %v552 = vsub.s32 32, %v551
    %v553 = vshll.u32 %v544, %v551
    %v554 = vshrl.u32 %v536, %v552
    %v555 = vor.u32 %v553, %v554
    %v556 = vsub.s32 4294967266, %v551
    %v557 = vadd.s32 %v556, 127
    %v558 = vshll.u32 %v557, 23
    %v559 = vor.u32 4788187, %v558
    %v560 = vand.u32 2147483647, %v559
    %v562 = vcvt.s32.f32 %v555
    %v563 = vmul.f32 %v562, %v560
    %v564 = vxor.u32 %v563, 2147483648
    %v565 = vsel %vm482, %v564, %v563
    %v566 = vsub.s32 4, %v542
    %v567 = vsel %vm482, %v566, %v542
    %v568 = vsel %vm481, %v53, %v565
    %v569 = vsel %vm481, 0, %v567
    %v570 = vcosq.f32.pop %v568
    %v571 = vsinq.f32.pop %v568
    %vm572 = vweird.f32 %v53
    %v573 = vand.u32 %v569, 3
    %vm574 = vcmp.lt.s32.totalorder %v573, 2
    %vm575 = vcmp.eq.s32.totalorder %v573, 0
    %v576 = vxor.u32 %v571, 2147483648
    %v577 = vsel %vm575, %v570, %v576
    %vm578 = vcmp.eq.s32.totalorder %v573, 2
    %v579 = vxor.u32 %v570, 2147483648
    %v580 = vsel %vm578, %v579, %v571
    %v581 = vsel %vm574, %v577, %v580
    %v582 = vsel %vm572, nan, %v581
    %v583 = vand.u32 2147483647, %v53
    %vm584 = vcmp.le.f32.partialorder %v583, 0.7853982
    %vm585 = vcmp.lt.s32.totalorder %v53, 0
    %v586 = vand.u32 %v53, 2139095040
    %v587 = vshrl.u32 %v586, 23
    %v588 = vsub.s32 %v587, 127
    %v589 = vand.u32 2147483647, %v53
    %v590 = vand.u32 %v589, 8388607
    %v591 = vor.u32 %v590, 8388608
    %v592 = vsub.s32 0, %v591
    %v593 = vadd.s32 %v588, 1
    %vm594 = vcmp.gt.s32.totalorder %v593, 0
    %v595 = vsel %vm594, %v593, 0
    %v596 = vshrl.u32 %v595, 5
    %v597 = vand.u32 %v595, 31
    %v598 = vsub.s32 32, %v597
    %v599 = vshrl.u32 683565275, %v598
    %v600 = vshll.u32 683565275, %v597
    %v601 = vshrl.u32 2475754826, %v598
    %v602 = vor.u32 %v600, %v601
    %v603 = vshll.u32 2475754826, %v597
    %v604 = vshrl.u32 2131351028, %v598
    %v605 = vor.u32 %v603, %v604
    %v606 = vshll.u32 2131351028, %v597
    %v607 = vshrl.u32 2102212464, %v598
    %v608 = vor.u32 %v606, %v607
    %v609 = vshll.u32 2102212464, %v597
    %v610 = vshrl.u32 920167782, %v598
    %v611 = vor.u32 %v609, %v610
    %v612 = vshll.u32 920167782, %v597
    %v613 = vshrl.u32 1326507024, %v598
    %v614 = vor.u32 %v612, %v613
    %vm615 = vcmp.lt.s32.totalorder %v596, 1
    %vm616 = vcmp.lt.s32.totalorder %v596, 2
    %vm617 = vcmp.lt.s32.totalorder %v596, 3
    %vm618 = vcmp.lt.s32.totalorder %v596, 4
    %v619 = vsel %vm615, %v599, %v602
    %v620 = vsel %vm618, %v608, 2102212464
    %v621 = vsel %vm617, %v605, %v620
    %v622 = vsel %vm616, %v619, %v621
    %v623 = vsel %vm615, %v602, %v605
    %v624 = vsel %vm618, %v611, 920167782
    %v625 = vsel %vm617, %v608, %v624
    %v626 = vsel %vm616, %v623, %v625
    %v627 = vsel %vm615, %v605, %v608
    %v628 = vsel %vm618, %v614, 1326507024
    %v629 = vsel %vm617, %v611, %v628
    %v630 = vsel %vm616, %v627, %v629
    %v631 = vshll.u32 %v591, 8
    %v632 = vmul.u32.u64.compose %v631, %v630
    %v633 = vextract.low.u32 %v632
    %v634 = vextract.high.u32 %v632
    %v635 = vmul.u32.u64.compose %v631, %v626
    %v636 = vextract.low.u32 %v635
    %v637 = vextract.high.u32 %v635
    %v638 = vmul.u32 %v631, %v622
    %v639 = vadd.s32 %v634, %v636
    %vm640 = vc.u32 %v634, %v636
    %v641 = vadd.s32 %v637, 1
    %v642 = vsel %vm640, %v641, %v637
    %v643 = vadd.s32 %v638, %v642
    %v644 = vadd.s32 %v643, 536870912
    %v645 = vshrl.u32 %v644, 30
    %v646 = vshll.u32 %v645, 30
    %v647 = vsub.s32 %v643, %v646
    %vm648 = vcmp.lt.s32.totalorder %v647, 0
    %v649 = vsub.s32 0, %v647
    %v650 = vsel %vm648, %v649, %v647
    %v651 = vclz %v650
    %v652 = vsub.s32 %v651, 2
    %vm653 = vcmp.gt.s32.totalorder 0, %v652
    %v654 = vsel %vm653, 0, %v652
    %v655 = vsub.s32 32, %v654
    %v656 = vshll.u32 %v647, %v654
    %v657 = vshrl.u32 %v639, %v655
    %v658 = vor.u32 %v656, %v657
    %v659 = vsub.s32 4294967266, %v654
    %v660 = vadd.s32 %v659, 127
    %v661 = vshll.u32 %v660, 23
    %v662 = vor.u32 4788187, %v661
    %v663 = vand.u32 2147483647, %v662
    %v665 = vcvt.s32.f32 %v658
    %v666 = vmul.f32 %v665, %v663
    %v667 = vxor.u32 %v666, 2147483648
    %v668 = vsel %vm585, %v667, %v666
    %v669 = vsub.s32 4, %v645
    %v670 = vsel %vm585, %v669, %v645
    %v671 = vsel %vm584, %v53, %v668
    %v672 = vsel %vm584, 0, %v670
    %v673 = vcosq.f32.pop %v671
    %v674 = vsinq.f32.pop %v671
    %vm675 = vweird.f32 %v53
    %v676 = vadd.s32 %v672, 3
    %v677 = vand.u32 %v676, 3
    %vm678 = vcmp.lt.s32.totalorder %v677, 2
    %vm679 = vcmp.eq.s32.totalorder %v677, 0
    %v680 = vxor.u32 %v674, 2147483648
    %v681 = vsel %vm679, %v673, %v680
    %vm682 = vcmp.eq.s32.totalorder %v677, 2
    %v683 = vxor.u32 %v673, 2147483648
    %v684 = vsel %vm682, %v683, %v674
    %v685 = vsel %vm678, %v681, %v684
    %v686 = vsel %vm675, nan, %v685
    %v687 = vrcp.pop %v375
    %v688 = vmul.f32 1.0, %v687
    %v689 = vmul.f32 %v479, %v688
    %v690 = vmul.f32 %v57, %v272
    %v691 = vmul.f32 %v59, %v168
    %v692 = vadd.f32 %v690, %v691
    %v693 = vmul.f32 %v692, %v689
    %v694 = vadd.f32 %v55, %v693
    %v695 = vmul.f32 %v57, %v168
    %v696 = vmul.f32 %v59, %v272
    %v697 = vsub.f32 %v695, %v696
    %v698 = vmul.f32 %v692, %v688
    %v699 = vmul.f32 %v55, -0.01
    %v700 = vmul.f32 %v57, %v59
    %v701 = vmul.f32 %v700, 0.03
    %v702 = vsub.f32 %v699, %v701
    %v703 = vmul.f32 %v48, 0.8333333
    %v704 = vsub.f32 %v44, %v703
    %v705 = vmul.f32 %v704, 0.125
    %v706 = vadd.f32 %v702, %v705
    %v707 = vmul.f32 %v706, 33.333332
    %v708 = vadd.f32 %v699, %v46
    %v709 = vmul.f32 %v708, 33.333332
    %v710 = vmul.f32 %v59, -0.01
    %v711 = vadd.f32 %v710, %v48
    %v712 = vmul.f32 %v711, 33.333332
    %v713 = vmul.f32 %v168, %v479
    %v714 = vmul.f32 %v713, %v582
    %v715 = vmul.f32 %v272, %v686
    %v716 = vadd.f32 %v714, %v715
    %v717 = vmul.f32 %v716, 0.8333333
    %v718 = vmul.f32 %v717, %v44
    %v719 = vmul.f32 %v61, 0.016666668
    %v720 = vsub.f32 %v718, %v719
    %v721 = vmul.f32 %v713, %v686
    %v722 = vmul.f32 %v272, %v582
    %v723 = vsub.f32 %v721, %v722
    %v724 = vmul.f32 %v723, 0.8333333
    %v725 = vmul.f32 %v724, %v44
    %v726 = vmul.f32 %v63, 0.016666668
    %v727 = vsub.f32 %v725, %v726
    %v728 = vmul.f32 %v44, %v168
    %v729 = vmul.f32 %v728, %v375
    %v730 = vmul.f32 %v65, 0.02
    %v731 = vsub.f32 %v729, %v730
    %v732 = vsub.f32 %v731, 11.772
    %v733 = vmul.f32 %v732, 0.8333333
    %v734 = vmul.f32 %v694, 0.02
    %v735 = vadd.f32 %v49, %v734
    %736 = vst [vmem:[#allocation7] sm:$0xff] %v735
    %v737 = vmul.f32 %v697, 0.02
    %v738 = vadd.f32 %v51, %v737
    %s739 = scalar_lea.vmem [#allocation7], 8
    %740 = vst [vmem:[%s739] sm:$0xff] %v738
    %v741 = vmul.f32 %v698, 0.02
    %v742 = vadd.f32 %v53, %v741
    %s743 = scalar_lea.vmem [#allocation7], 16
    %744 = vst [vmem:[%s743] sm:$0xff] %v742
    %v745 = vmul.f32 %v707, 0.02
    %v746 = vadd.f32 %v55, %v745
    %s747 = scalar_lea.vmem [#allocation7], 24
    %748 = vst [vmem:[%s747] sm:$0xff] %v746
    %v749 = vmul.f32 %v709, 0.02
    %v750 = vadd.f32 %v57, %v749
    %s751 = scalar_lea.vmem [#allocation7], 32
    %752 = vst [vmem:[%s751] sm:$0xff] %v750
    %v753 = vmul.f32 %v712, 0.02
    %v754 = vadd.f32 %v59, %v753
    %s755 = scalar_lea.vmem [#allocation7], 40
    %756 = vst [vmem:[%s755] sm:$0xff] %v754
    %v757 = vmul.f32 %v720, 0.02
    %v758 = vadd.f32 %v61, %v757
    %s759 = scalar_lea.vmem [#allocation7], 48
    %760 = vst [vmem:[%s759] sm:$0xff] %v758
    %v761 = vmul.f32 %v727, 0.02
    %v762 = vadd.f32 %v63, %v761
    %s763 = scalar_lea.vmem [#allocation7], 56
    %764 = vst [vmem:[%s763] sm:$0xff] %v762
    %v765 = vmul.f32 %v733, 0.02
    %v766 = vadd.f32 %v65, %v765
    %s767 = scalar_lea.vmem [#allocation7], 64
    %768 = vst [vmem:[%s767] sm:$0xff] %v766
    // Predicated region
    $region18: #{tpu_custom_call.1} parent=1 // pred_check
      _
    $region19: #{tpu_custom_call.1} parent=1 // pred_check_branch
      %770 = sbr.rel (0) target = $region21
    $region20: #{tpu_custom_call.1} parent=1 // pred_region
      %s772 = ssub.s32 1152, 1152
      %773 = vsyncadd [#allocation4], %s772
      %s774 = smul.addr %s6, 128
      %s775 = scalar_lea.hbm %s2, %s774
      %s776 = sshll.u32 [#allocation7], 4
      %s777 = int_to_ptr.vmem [resolvable:$true] %s776
      %782 = dma.vmem_to_hbm [thread:$0]  %s777, 1152, %s775, [#allocation4], 128, 128, 8
    $region21: #{tpu_custom_call.1} parent=1 // pred_fallthru
      _
    // Predicated region
    $region22: #{tpu_custom_call.1} parent=1 // pred_check
      _
    $region23: #{tpu_custom_call.1} parent=1 // pred_check_branch
      %784 = sbr.rel (0) target = $region25
    $region24: #{tpu_custom_call.1} parent=1 // pred_region
      %785 = dma.done [#allocation4], 1152
    $region25: #{tpu_custom_call.1} parent=1 // pred_fallthru
      _
    %786 = vsyncpa [#allocation3], 1
    %787 = vsyncpa [#allocation6], 1
    %788 = vsyncpa [#allocation4], 1

// kernel: tpu_custom_call.1
$region0: #{tpu_custom_call.1}
  #allocation0 [shape = 'u32[]', space=smem, size = 0x4, offset = 0x4, fixed_abs, tag = 'smem constant byte address 0x4 - core index']
  #allocation1 [shape = 'u32[144,128]{1,0:T(1,128)}', space=vmem, size = 0x12000, scoped, tag = 'internal scratch']
  %s0 = inlined_call_operand.vmem [shape: f32[3,8,128], index: 0, kind: input, shape index: {}]
  %s1 = inlined_call_operand.hbm [shape: f32[9,8,128], index: 1, kind: input, shape index: {}, may-alias: {1,2}]
  %s2 = inlined_call_operand.hbm [shape: f32[9,8,128], index: 2, kind: output, shape index: {}, may-alias: {1,2}]
  %s3 = sld [smem:[#allocation0]]
  $region22: #{tpu_custom_call.1} parent=0
    _
  %s5 = ssub.s32 1, %s3
  %s6 = scalar_select 0, %s5, %s3
  $region1: #{tpu_custom_call.1} parent=0
    #allocation2 [shape = 'u8[36864]{0}', space=vmem, size = 0x9000, scoped, tag = 'input window, operand 1, single buffered']
    #allocation3 [shape = 's32[1]{0}', space=sflag, size = 0x4, scoped, tag = 'scoped memory for tpu_custom_call.1']
    #allocation4 [shape = 's32[1]{0}', space=sflag, size = 0x4, scoped, tag = 'scoped memory for tpu_custom_call.1']
    #allocation5 [shape = 'u8[36864]{0}', space=vmem, size = 0x9000, scoped, tag = 'output window, operand 0, single buffered']
    %7 = vsyncpa [#allocation3], 0
    %8 = vsyncpa [#allocation4], 0
    // Predicated region
    $region2: #{tpu_custom_call.1} parent=1 // pred_check
      _
    $region3: #{tpu_custom_call.1} parent=1 // pred_check_branch
      %10 = sbr.rel (0) target = $region5
    $region4: #{tpu_custom_call.1} parent=1 // pred_region
      _
    $region5: #{tpu_custom_call.1} parent=1 // pred_fallthru
      _
    // Predicated region
    $region6: #{tpu_custom_call.1} parent=1 // pred_check
      _
    $region7: #{tpu_custom_call.1} parent=1 // pred_check_branch
      %12 = sbr.rel (0) target = $region9
    $region8: #{tpu_custom_call.1} parent=1 // pred_region
      %s14 = ssub.s32 1152, 1152
      %15 = vsyncadd [#allocation3], %s14
      %s16 = sshll.u32 [#allocation2], 4
      %s17 = int_to_ptr.vmem [resolvable:$true] %s16
      %22 = dma.hbm_to_vmem [thread:$0]  %s1, 1152, %s17, [#allocation3], 128, 128, 8
    $region9: #{tpu_custom_call.1} parent=1 // pred_fallthru
      _
    // Predicated region
    $region10: #{tpu_custom_call.1} parent=1 // pred_check
      _
    $region11: #{tpu_custom_call.1} parent=1 // pred_check_branch
      %24 = sbr.rel (0) target = $region13
    $region12: #{tpu_custom_call.1} parent=1 // pred_region
      %25 = dma.done [#allocation3], 1152
    $region13: #{tpu_custom_call.1} parent=1 // pred_fallthru
      _
    %v26 = vld [vmem:[%s0] sm:$0xff]
    %s27 = scalar_lea.vmem %s0, 8
    %v28 = vld [vmem:[%s27] sm:$0xff]
    %s29 = scalar_lea.vmem %s0, 16
    %v30 = vld [vmem:[%s29] sm:$0xff]
    %v31 = vld [vmem:[#allocation2] sm:$0xff]
    %s32 = scalar_lea.vmem [#allocation2], 8
    %v33 = vld [vmem:[%s32] sm:$0xff]
    %s34 = scalar_lea.vmem [#allocation2], 16
    %v35 = vld [vmem:[%s34] sm:$0xff]
    %s36 = scalar_lea.vmem [#allocation2], 24
    %v37 = vld [vmem:[%s36] sm:$0xff]
    %s38 = scalar_lea.vmem [#allocation2], 32
    %v39 = vld [vmem:[%s38] sm:$0xff]
    %s40 = scalar_lea.vmem [#allocation2], 40
    %v41 = vld [vmem:[%s40] sm:$0xff]
    %s42 = scalar_lea.vmem [#allocation2], 48
    %v43 = vld [vmem:[%s42] sm:$0xff]
    %s44 = scalar_lea.vmem [#allocation2], 56
    %v45 = vld [vmem:[%s44] sm:$0xff]
    %s46 = scalar_lea.vmem [#allocation2], 64
    %v47 = vld [vmem:[%s46] sm:$0xff]
    %v48 = vand.u32 2147483647, %v31
    %vm49 = vcmp.le.f32.partialorder %v48, 0.7853982
    %vm50 = vcmp.lt.s32.totalorder %v31, 0
    %v51 = vand.u32 %v31, 2139095040
    %v52 = vshrl.u32 %v51, 23
    %v53 = vsub.s32 %v52, 127
    %v54 = vand.u32 2147483647, %v31
    %v55 = vand.u32 %v54, 8388607
    %v56 = vor.u32 %v55, 8388608
    %v57 = vsub.s32 0, %v56
    %v58 = vadd.s32 %v53, 1
    %vm59 = vcmp.gt.s32.totalorder %v58, 0
    %v60 = vsel %vm59, %v58, 0
    %v61 = vshrl.u32 %v60, 5
    %v62 = vand.u32 %v60, 31
    %v63 = vsub.s32 32, %v62
    %v64 = vshrl.u32 683565275, %v63
    %v65 = vshll.u32 683565275, %v62
    %v66 = vshrl.u32 2475754826, %v63
    %v67 = vor.u32 %v65, %v66
    %v68 = vshll.u32 2475754826, %v62
    %v69 = vshrl.u32 2131351028, %v63
    %v70 = vor.u32 %v68, %v69
    %v71 = vshll.u32 2131351028, %v62
    %v72 = vshrl.u32 2102212464, %v63
    %v73 = vor.u32 %v71, %v72
    %v74 = vshll.u32 2102212464, %v62
    %v75 = vshrl.u32 920167782, %v63
    %v76 = vor.u32 %v74, %v75
    %v77 = vshll.u32 920167782, %v62
    %v78 = vshrl.u32 1326507024, %v63
    %v79 = vor.u32 %v77, %v78
    %vm80 = vcmp.lt.s32.totalorder %v61, 1
    %vm81 = vcmp.lt.s32.totalorder %v61, 2
    %vm82 = vcmp.lt.s32.totalorder %v61, 3
    %vm83 = vcmp.lt.s32.totalorder %v61, 4
    %v84 = vsel %vm80, %v64, %v67
    %v85 = vsel %vm83, %v73, 2102212464
    %v86 = vsel %vm82, %v70, %v85
    %v87 = vsel %vm81, %v84, %v86
    %v88 = vsel %vm80, %v67, %v70
    %v89 = vsel %vm83, %v76, 920167782
    %v90 = vsel %vm82, %v73, %v89
    %v91 = vsel %vm81, %v88, %v90
    %v92 = vsel %vm80, %v70, %v73
    %v93 = vsel %vm83, %v79, 1326507024
    %v94 = vsel %vm82, %v76, %v93
    %v95 = vsel %vm81, %v92, %v94
    %v96 = vshll.u32 %v56, 8
    %v97 = vmul.u32.u64.compose %v96, %v95
    %v98 = vextract.low.u32 %v97
    %v99 = vextract.high.u32 %v97
    %v100 = vmul.u32.u64.compose %v96, %v91
    %v101 = vextract.low.u32 %v100
    %v102 = vextract.high.u32 %v100
    %v103 = vmul.u32 %v96, %v87
    %v104 = vadd.s32 %v99, %v101
    %vm105 = vc.u32 %v99, %v101
    %v106 = vadd.s32 %v102, 1
    %v107 = vsel %vm105, %v106, %v102
    %v108 = vadd.s32 %v103, %v107
    %v109 = vadd.s32 %v108, 536870912
    %v110 = vshrl.u32 %v109, 30
    %v111 = vshll.u32 %v110, 30
    %v112 = vsub.s32 %v108, %v111
    %vm113 = vcmp.lt.s32.totalorder %v112, 0
    %v114 = vsub.s32 0, %v112
    %v115 = vsel %vm113, %v114, %v112
    %v116 = vclz %v115
    %v117 = vsub.s32 %v116, 2
    %vm118 = vcmp.gt.s32.totalorder 0, %v117
    %v119 = vsel %vm118, 0, %v117
    %v120 = vsub.s32 32, %v119
    %v121 = vshll.u32 %v112, %v119
    %v122 = vshrl.u32 %v104, %v120
    %v123 = vor.u32 %v121, %v122
    %v124 = vsub.s32 4294967266, %v119
    %v125 = vadd.s32 %v124, 127
    %v126 = vshll.u32 %v125, 23
    %v127 = vor.u32 4788187, %v126
    %v128 = vand.u32 2147483647, %v127
    %v130 = vcvt.s32.f32 %v123
    %v131 = vmul.f32 %v130, %v128
    %v132 = vxor.u32 %v131, 2147483648
    %v133 = vsel %vm50, %v132, %v131
    %v134 = vsub.s32 4, %v110
    %v135 = vsel %vm50, %v134, %v110
    %v136 = vsel %vm49, %v31, %v133
    %v137 = vsel %vm49, 0, %v135
    %v138 = vcosq.f32.pop %v136
    %v139 = vsinq.f32.pop %v136
    %vm140 = vweird.f32 %v31
    %v141 = vand.u32 %v137, 3
    %vm142 = vcmp.lt.s32.totalorder %v141, 2
    %vm143 = vcmp.eq.s32.totalorder %v141, 0
    %v144 = vxor.u32 %v139, 2147483648
    %v145 = vsel %vm143, %v138, %v144
    %vm146 = vcmp.eq.s32.totalorder %v141, 2
    %v147 = vxor.u32 %v138, 2147483648
    %v148 = vsel %vm146, %v147, %v139
    %v149 = vsel %vm142, %v145, %v148
    %v150 = vsel %vm140, nan, %v149
    %v151 = vand.u32 2147483647, %v31
    %vm152 = vcmp.le.f32.partialorder %v151, 0.7853982
    %vm153 = vcmp.lt.s32.totalorder %v31, 0
    %v154 = vand.u32 %v31, 2139095040
    %v155 = vshrl.u32 %v154, 23
    %v156 = vsub.s32 %v155, 127
    %v157 = vand.u32 2147483647, %v31
    %v158 = vand.u32 %v157, 8388607
    %v159 = vor.u32 %v158, 8388608
    %v160 = vsub.s32 0, %v159
    %v161 = vadd.s32 %v156, 1
    %vm162 = vcmp.gt.s32.totalorder %v161, 0
    %v163 = vsel %vm162, %v161, 0
    %v164 = vshrl.u32 %v163, 5
    %v165 = vand.u32 %v163, 31
    %v166 = vsub.s32 32, %v165
    %v167 = vshrl.u32 683565275, %v166
    %v168 = vshll.u32 683565275, %v165
    %v169 = vshrl.u32 2475754826, %v166
    %v170 = vor.u32 %v168, %v169
    %v171 = vshll.u32 2475754826, %v165
    %v172 = vshrl.u32 2131351028, %v166
    %v173 = vor.u32 %v171, %v172
    %v174 = vshll.u32 2131351028, %v165
    %v175 = vshrl.u32 2102212464, %v166
    %v176 = vor.u32 %v174, %v175
    %v177 = vshll.u32 2102212464, %v165
    %v178 = vshrl.u32 920167782, %v166
    %v179 = vor.u32 %v177, %v178
    %v180 = vshll.u32 920167782, %v165
    %v181 = vshrl.u32 1326507024, %v166
    %v182 = vor.u32 %v180, %v181
    %vm183 = vcmp.lt.s32.totalorder %v164, 1
    %vm184 = vcmp.lt.s32.totalorder %v164, 2
    %vm185 = vcmp.lt.s32.totalorder %v164, 3
    %vm186 = vcmp.lt.s32.totalorder %v164, 4
    %v187 = vsel %vm183, %v167, %v170
    %v188 = vsel %vm186, %v176, 2102212464
    %v189 = vsel %vm185, %v173, %v188
    %v190 = vsel %vm184, %v187, %v189
    %v191 = vsel %vm183, %v170, %v173
    %v192 = vsel %vm186, %v179, 920167782
    %v193 = vsel %vm185, %v176, %v192
    %v194 = vsel %vm184, %v191, %v193
    %v195 = vsel %vm183, %v173, %v176
    %v196 = vsel %vm186, %v182, 1326507024
    %v197 = vsel %vm185, %v179, %v196
    %v198 = vsel %vm184, %v195, %v197
    %v199 = vshll.u32 %v159, 8
    %v200 = vmul.u32.u64.compose %v199, %v198
    %v201 = vextract.low.u32 %v200
    %v202 = vextract.high.u32 %v200
    %v203 = vmul.u32.u64.compose %v199, %v194
    %v204 = vextract.low.u32 %v203
    %v205 = vextract.high.u32 %v203
    %v206 = vmul.u32 %v199, %v190
    %v207 = vadd.s32 %v202, %v204
    %vm208 = vc.u32 %v202, %v204
    %v209 = vadd.s32 %v205, 1
    %v210 = vsel %vm208, %v209, %v205
    %v211 = vadd.s32 %v206, %v210
    %v212 = vadd.s32 %v211, 536870912
    %v213 = vshrl.u32 %v212, 30
    %v214 = vshll.u32 %v213, 30
    %v215 = vsub.s32 %v211, %v214
    %vm216 = vcmp.lt.s32.totalorder %v215, 0
    %v217 = vsub.s32 0, %v215
    %v218 = vsel %vm216, %v217, %v215
    %v219 = vclz %v218
    %v220 = vsub.s32 %v219, 2
    %vm221 = vcmp.gt.s32.totalorder 0, %v220
    %v222 = vsel %vm221, 0, %v220
    %v223 = vsub.s32 32, %v222
    %v224 = vshll.u32 %v215, %v222
    %v225 = vshrl.u32 %v207, %v223
    %v226 = vor.u32 %v224, %v225
    %v227 = vsub.s32 4294967266, %v222
    %v228 = vadd.s32 %v227, 127
    %v229 = vshll.u32 %v228, 23
    %v230 = vor.u32 4788187, %v229
    %v231 = vand.u32 2147483647, %v230
    %v233 = vcvt.s32.f32 %v226
    %v234 = vmul.f32 %v233, %v231
    %v235 = vxor.u32 %v234, 2147483648
    %v236 = vsel %vm153, %v235, %v234
    %v237 = vsub.s32 4, %v213
    %v238 = vsel %vm153, %v237, %v213
    %v239 = vsel %vm152, %v31, %v236
    %v240 = vsel %vm152, 0, %v238
    %v241 = vcosq.f32.pop %v239
    %v242 = vsinq.f32.pop %v239
    %vm243 = vweird.f32 %v31
    %v244 = vadd.s32 %v240, 3
    %v245 = vand.u32 %v244, 3
    %vm246 = vcmp.lt.s32.totalorder %v245, 2
    %vm247 = vcmp.eq.s32.totalorder %v245, 0
    %v248 = vxor.u32 %v242, 2147483648
    %v249 = vsel %vm247, %v241, %v248
    %vm250 = vcmp.eq.s32.totalorder %v245, 2
    %v251 = vxor.u32 %v241, 2147483648
    %v252 = vsel %vm250, %v251, %v242
    %v253 = vsel %vm246, %v249, %v252
    %v254 = vsel %vm243, nan, %v253
    %v255 = vand.u32 2147483647, %v33
    %vm256 = vcmp.le.f32.partialorder %v255, 0.7853982
    %vm257 = vcmp.lt.s32.totalorder %v33, 0
    %v258 = vand.u32 %v33, 2139095040
    %v259 = vshrl.u32 %v258, 23
    %v260 = vsub.s32 %v259, 127
    %v261 = vand.u32 2147483647, %v33
    %v262 = vand.u32 %v261, 8388607
    %v263 = vor.u32 %v262, 8388608
    %v264 = vsub.s32 0, %v263
    %v265 = vadd.s32 %v260, 1
    %vm266 = vcmp.gt.s32.totalorder %v265, 0
    %v267 = vsel %vm266, %v265, 0
    %v268 = vshrl.u32 %v267, 5
    %v269 = vand.u32 %v267, 31
    %v270 = vsub.s32 32, %v269
    %v271 = vshrl.u32 683565275, %v270
    %v272 = vshll.u32 683565275, %v269
    %v273 = vshrl.u32 2475754826, %v270
    %v274 = vor.u32 %v272, %v273
    %v275 = vshll.u32 2475754826, %v269
    %v276 = vshrl.u32 2131351028, %v270
    %v277 = vor.u32 %v275, %v276
    %v278 = vshll.u32 2131351028, %v269
    %v279 = vshrl.u32 2102212464, %v270
    %v280 = vor.u32 %v278, %v279
    %v281 = vshll.u32 2102212464, %v269
    %v282 = vshrl.u32 920167782, %v270
    %v283 = vor.u32 %v281, %v282
    %v284 = vshll.u32 920167782, %v269
    %v285 = vshrl.u32 1326507024, %v270
    %v286 = vor.u32 %v284, %v285
    %vm287 = vcmp.lt.s32.totalorder %v268, 1
    %vm288 = vcmp.lt.s32.totalorder %v268, 2
    %vm289 = vcmp.lt.s32.totalorder %v268, 3
    %vm290 = vcmp.lt.s32.totalorder %v268, 4
    %v291 = vsel %vm287, %v271, %v274
    %v292 = vsel %vm290, %v280, 2102212464
    %v293 = vsel %vm289, %v277, %v292
    %v294 = vsel %vm288, %v291, %v293
    %v295 = vsel %vm287, %v274, %v277
    %v296 = vsel %vm290, %v283, 920167782
    %v297 = vsel %vm289, %v280, %v296
    %v298 = vsel %vm288, %v295, %v297
    %v299 = vsel %vm287, %v277, %v280
    %v300 = vsel %vm290, %v286, 1326507024
    %v301 = vsel %vm289, %v283, %v300
    %v302 = vsel %vm288, %v299, %v301
    %v303 = vshll.u32 %v263, 8
    %v304 = vmul.u32.u64.compose %v303, %v302
    %v305 = vextract.low.u32 %v304
    %v306 = vextract.high.u32 %v304
    %v307 = vmul.u32.u64.compose %v303, %v298
    %v308 = vextract.low.u32 %v307
    %v309 = vextract.high.u32 %v307
    %v310 = vmul.u32 %v303, %v294
    %v311 = vadd.s32 %v306, %v308
    %vm312 = vc.u32 %v306, %v308
    %v313 = vadd.s32 %v309, 1
    %v314 = vsel %vm312, %v313, %v309
    %v315 = vadd.s32 %v310, %v314
    %v316 = vadd.s32 %v315, 536870912
    %v317 = vshrl.u32 %v316, 30
    %v318 = vshll.u32 %v317, 30
    %v319 = vsub.s32 %v315, %v318
    %vm320 = vcmp.lt.s32.totalorder %v319, 0
    %v321 = vsub.s32 0, %v319
    %v322 = vsel %vm320, %v321, %v319
    %v323 = vclz %v322
    %v324 = vsub.s32 %v323, 2
    %vm325 = vcmp.gt.s32.totalorder 0, %v324
    %v326 = vsel %vm325, 0, %v324
    %v327 = vsub.s32 32, %v326
    %v328 = vshll.u32 %v319, %v326
    %v329 = vshrl.u32 %v311, %v327
    %v330 = vor.u32 %v328, %v329
    %v331 = vsub.s32 4294967266, %v326
    %v332 = vadd.s32 %v331, 127
    %v333 = vshll.u32 %v332, 23
    %v334 = vor.u32 4788187, %v333
    %v335 = vand.u32 2147483647, %v334
    %v337 = vcvt.s32.f32 %v330
    %v338 = vmul.f32 %v337, %v335
    %v339 = vxor.u32 %v338, 2147483648
    %v340 = vsel %vm257, %v339, %v338
    %v341 = vsub.s32 4, %v317
    %v342 = vsel %vm257, %v341, %v317
    %v343 = vsel %vm256, %v33, %v340
    %v344 = vsel %vm256, 0, %v342
    %v345 = vcosq.f32.pop %v343
    %v346 = vsinq.f32.pop %v343
    %vm347 = vweird.f32 %v33
    %v348 = vand.u32 %v344, 3
    %vm349 = vcmp.lt.s32.totalorder %v348, 2
    %vm350 = vcmp.eq.s32.totalorder %v348, 0
    %v351 = vxor.u32 %v346, 2147483648
    %v352 = vsel %vm350, %v345, %v351
    %vm353 = vcmp.eq.s32.totalorder %v348, 2
    %v354 = vxor.u32 %v345, 2147483648
    %v355 = vsel %vm353, %v354, %v346
    %v356 = vsel %vm349, %v352, %v355
    %v357 = vsel %vm347, nan, %v356
    %v358 = vand.u32 2147483647, %v33
    %vm359 = vcmp.le.f32.partialorder %v358, 0.7853982
    %vm360 = vcmp.lt.s32.totalorder %v33, 0
    %v361 = vand.u32 %v33, 2139095040
    %v362 = vshrl.u32 %v361, 23
    %v363 = vsub.s32 %v362, 127
    %v364 = vand.u32 2147483647, %v33
    %v365 = vand.u32 %v364, 8388607
    %v366 = vor.u32 %v365, 8388608
    %v367 = vsub.s32 0, %v366
    %v368 = vadd.s32 %v363, 1
    %vm369 = vcmp.gt.s32.totalorder %v368, 0
    %v370 = vsel %vm369, %v368, 0
    %v371 = vshrl.u32 %v370, 5
    %v372 = vand.u32 %v370, 31
    %v373 = vsub.s32 32, %v372
    %v374 = vshrl.u32 683565275, %v373
    %v375 = vshll.u32 683565275, %v372
    %v376 = vshrl.u32 2475754826, %v373
    %v377 = vor.u32 %v375, %v376
    %v378 = vshll.u32 2475754826, %v372
    %v379 = vshrl.u32 2131351028, %v373
    %v380 = vor.u32 %v378, %v379
    %v381 = vshll.u32 2131351028, %v372
    %v382 = vshrl.u32 2102212464, %v373
    %v383 = vor.u32 %v381, %v382
    %v384 = vshll.u32 2102212464, %v372
    %v385 = vshrl.u32 920167782, %v373
    %v386 = vor.u32 %v384, %v385
    %v387 = vshll.u32 920167782, %v372
    %v388 = vshrl.u32 1326507024, %v373
    %v389 = vor.u32 %v387, %v388
    %vm390 = vcmp.lt.s32.totalorder %v371, 1
    %vm391 = vcmp.lt.s32.totalorder %v371, 2
    %vm392 = vcmp.lt.s32.totalorder %v371, 3
    %vm393 = vcmp.lt.s32.totalorder %v371, 4
    %v394 = vsel %vm390, %v374, %v377
    %v395 = vsel %vm393, %v383, 2102212464
    %v396 = vsel %vm392, %v380, %v395
    %v397 = vsel %vm391, %v394, %v396
    %v398 = vsel %vm390, %v377, %v380
    %v399 = vsel %vm393, %v386, 920167782
    %v400 = vsel %vm392, %v383, %v399
    %v401 = vsel %vm391, %v398, %v400
    %v402 = vsel %vm390, %v380, %v383
    %v403 = vsel %vm393, %v389, 1326507024
    %v404 = vsel %vm392, %v386, %v403
    %v405 = vsel %vm391, %v402, %v404
    %v406 = vshll.u32 %v366, 8
    %v407 = vmul.u32.u64.compose %v406, %v405
    %v408 = vextract.low.u32 %v407
    %v409 = vextract.high.u32 %v407
    %v410 = vmul.u32.u64.compose %v406, %v401
    %v411 = vextract.low.u32 %v410
    %v412 = vextract.high.u32 %v410
    %v413 = vmul.u32 %v406, %v397
    %v414 = vadd.s32 %v409, %v411
    %vm415 = vc.u32 %v409, %v411
    %v416 = vadd.s32 %v412, 1
    %v417 = vsel %vm415, %v416, %v412
    %v418 = vadd.s32 %v413, %v417
    %v419 = vadd.s32 %v418, 536870912
    %v420 = vshrl.u32 %v419, 30
    %v421 = vshll.u32 %v420, 30
    %v422 = vsub.s32 %v418, %v421
    %vm423 = vcmp.lt.s32.totalorder %v422, 0
    %v424 = vsub.s32 0, %v422
    %v425 = vsel %vm423, %v424, %v422
    %v426 = vclz %v425
    %v427 = vsub.s32 %v426, 2
    %vm428 = vcmp.gt.s32.totalorder 0, %v427
    %v429 = vsel %vm428, 0, %v427
    %v430 = vsub.s32 32, %v429
    %v431 = vshll.u32 %v422, %v429
    %v432 = vshrl.u32 %v414, %v430
    %v433 = vor.u32 %v431, %v432
    %v434 = vsub.s32 4294967266, %v429
    %v435 = vadd.s32 %v434, 127
    %v436 = vshll.u32 %v435, 23
    %v437 = vor.u32 4788187, %v436
    %v438 = vand.u32 2147483647, %v437
    %v440 = vcvt.s32.f32 %v433
    %v441 = vmul.f32 %v440, %v438
    %v442 = vxor.u32 %v441, 2147483648
    %v443 = vsel %vm360, %v442, %v441
    %v444 = vsub.s32 4, %v420
    %v445 = vsel %vm360, %v444, %v420
    %v446 = vsel %vm359, %v33, %v443
    %v447 = vsel %vm359, 0, %v445
    %v448 = vcosq.f32.pop %v446
    %v449 = vsinq.f32.pop %v446
    %vm450 = vweird.f32 %v33
    %v451 = vadd.s32 %v447, 3
    %v452 = vand.u32 %v451, 3
    %vm453 = vcmp.lt.s32.totalorder %v452, 2
    %vm454 = vcmp.eq.s32.totalorder %v452, 0
    %v455 = vxor.u32 %v449, 2147483648
    %v456 = vsel %vm454, %v448, %v455
    %vm457 = vcmp.eq.s32.totalorder %v452, 2
    %v458 = vxor.u32 %v448, 2147483648
    %v459 = vsel %vm457, %v458, %v449
    %v460 = vsel %vm453, %v456, %v459
    %v461 = vsel %vm450, nan, %v460
    %v462 = vand.u32 2147483647, %v35
    %vm463 = vcmp.le.f32.partialorder %v462, 0.7853982
    %vm464 = vcmp.lt.s32.totalorder %v35, 0
    %v465 = vand.u32 %v35, 2139095040
    %v466 = vshrl.u32 %v465, 23
    %v467 = vsub.s32 %v466, 127
    %v468 = vand.u32 2147483647, %v35
    %v469 = vand.u32 %v468, 8388607
    %v470 = vor.u32 %v469, 8388608
    %v471 = vsub.s32 0, %v470
    %v472 = vadd.s32 %v467, 1
    %vm473 = vcmp.gt.s32.totalorder %v472, 0
    %v474 = vsel %vm473, %v472, 0
    %v475 = vshrl.u32 %v474, 5
    %v476 = vand.u32 %v474, 31
    %v477 = vsub.s32 32, %v476
    %v478 = vshrl.u32 683565275, %v477
    %v479 = vshll.u32 683565275, %v476
    %v480 = vshrl.u32 2475754826, %v477
    %v481 = vor.u32 %v479, %v480
    %v482 = vshll.u32 2475754826, %v476
    %v483 = vshrl.u32 2131351028, %v477
    %v484 = vor.u32 %v482, %v483
    %v485 = vshll.u32 2131351028, %v476
    %v486 = vshrl.u32 2102212464, %v477
    %v487 = vor.u32 %v485, %v486
    %v488 = vshll.u32 2102212464, %v476
    %v489 = vshrl.u32 920167782, %v477
    %v490 = vor.u32 %v488, %v489
    %v491 = vshll.u32 920167782, %v476
    %v492 = vshrl.u32 1326507024, %v477
    %v493 = vor.u32 %v491, %v492
    %vm494 = vcmp.lt.s32.totalorder %v475, 1
    %vm495 = vcmp.lt.s32.totalorder %v475, 2
    %vm496 = vcmp.lt.s32.totalorder %v475, 3
    %vm497 = vcmp.lt.s32.totalorder %v475, 4
    %v498 = vsel %vm494, %v478, %v481
    %v499 = vsel %vm497, %v487, 2102212464
    %v500 = vsel %vm496, %v484, %v499
    %v501 = vsel %vm495, %v498, %v500
    %v502 = vsel %vm494, %v481, %v484
    %v503 = vsel %vm497, %v490, 920167782
    %v504 = vsel %vm496, %v487, %v503
    %v505 = vsel %vm495, %v502, %v504
    %v506 = vsel %vm494, %v484, %v487
    %v507 = vsel %vm497, %v493, 1326507024
    %v508 = vsel %vm496, %v490, %v507
    %v509 = vsel %vm495, %v506, %v508
    %v510 = vshll.u32 %v470, 8
    %v511 = vmul.u32.u64.compose %v510, %v509
    %v512 = vextract.low.u32 %v511
    %v513 = vextract.high.u32 %v511
    %v514 = vmul.u32.u64.compose %v510, %v505
    %v515 = vextract.low.u32 %v514
    %v516 = vextract.high.u32 %v514
    %v517 = vmul.u32 %v510, %v501
    %v518 = vadd.s32 %v513, %v515
    %vm519 = vc.u32 %v513, %v515
    %v520 = vadd.s32 %v516, 1
    %v521 = vsel %vm519, %v520, %v516
    %v522 = vadd.s32 %v517, %v521
    %v523 = vadd.s32 %v522, 536870912
    %v524 = vshrl.u32 %v523, 30
    %v525 = vshll.u32 %v524, 30
    %v526 = vsub.s32 %v522, %v525
    %vm527 = vcmp.lt.s32.totalorder %v526, 0
    %v528 = vsub.s32 0, %v526
    %v529 = vsel %vm527, %v528, %v526
    %v530 = vclz %v529
    %v531 = vsub.s32 %v530, 2
    %vm532 = vcmp.gt.s32.totalorder 0, %v531
    %v533 = vsel %vm532, 0, %v531
    %v534 = vsub.s32 32, %v533
    %v535 = vshll.u32 %v526, %v533
    %v536 = vshrl.u32 %v518, %v534
    %v537 = vor.u32 %v535, %v536
    %v538 = vsub.s32 4294967266, %v533
    %v539 = vadd.s32 %v538, 127
    %v540 = vshll.u32 %v539, 23
    %v541 = vor.u32 4788187, %v540
    %v542 = vand.u32 2147483647, %v541
    %v544 = vcvt.s32.f32 %v537
    %v545 = vmul.f32 %v544, %v542
    %v546 = vxor.u32 %v545, 2147483648
    %v547 = vsel %vm464, %v546, %v545
    %v548 = vsub.s32 4, %v524
    %v549 = vsel %vm464, %v548, %v524
    %v550 = vsel %vm463, %v35, %v547
    %v551 = vsel %vm463, 0, %v549
    %v552 = vcosq.f32.pop %v550
    %v553 = vsinq.f32.pop %v550
    %vm554 = vweird.f32 %v35
    %v555 = vand.u32 %v551, 3
    %vm556 = vcmp.lt.s32.totalorder %v555, 2
    %vm557 = vcmp.eq.s32.totalorder %v555, 0
    %v558 = vxor.u32 %v553, 2147483648
    %v559 = vsel %vm557, %v552, %v558
    %vm560 = vcmp.eq.s32.totalorder %v555, 2
    %v561 = vxor.u32 %v552, 2147483648
    %v562 = vsel %vm560, %v561, %v553
    %v563 = vsel %vm556, %v559, %v562
    %v564 = vsel %vm554, nan, %v563
    %v565 = vand.u32 2147483647, %v35
    %vm566 = vcmp.le.f32.partialorder %v565, 0.7853982
    %vm567 = vcmp.lt.s32.totalorder %v35, 0
    %v568 = vand.u32 %v35, 2139095040
    %v569 = vshrl.u32 %v568, 23
    %v570 = vsub.s32 %v569, 127
    %v571 = vand.u32 2147483647, %v35
    %v572 = vand.u32 %v571, 8388607
    %v573 = vor.u32 %v572, 8388608
    %v574 = vsub.s32 0, %v573
    %v575 = vadd.s32 %v570, 1
    %vm576 = vcmp.gt.s32.totalorder %v575, 0
    %v577 = vsel %vm576, %v575, 0
    %v578 = vshrl.u32 %v577, 5
    %v579 = vand.u32 %v577, 31
    %v580 = vsub.s32 32, %v579
    %v581 = vshrl.u32 683565275, %v580
    %v582 = vshll.u32 683565275, %v579
    %v583 = vshrl.u32 2475754826, %v580
    %v584 = vor.u32 %v582, %v583
    %v585 = vshll.u32 2475754826, %v579
    %v586 = vshrl.u32 2131351028, %v580
    %v587 = vor.u32 %v585, %v586
    %v588 = vshll.u32 2131351028, %v579
    %v589 = vshrl.u32 2102212464, %v580
    %v590 = vor.u32 %v588, %v589
    %v591 = vshll.u32 2102212464, %v579
    %v592 = vshrl.u32 920167782, %v580
    %v593 = vor.u32 %v591, %v592
    %v594 = vshll.u32 920167782, %v579
    %v595 = vshrl.u32 1326507024, %v580
    %v596 = vor.u32 %v594, %v595
    %vm597 = vcmp.lt.s32.totalorder %v578, 1
    %vm598 = vcmp.lt.s32.totalorder %v578, 2
    %vm599 = vcmp.lt.s32.totalorder %v578, 3
    %vm600 = vcmp.lt.s32.totalorder %v578, 4
    %v601 = vsel %vm597, %v581, %v584
    %v602 = vsel %vm600, %v590, 2102212464
    %v603 = vsel %vm599, %v587, %v602
    %v604 = vsel %vm598, %v601, %v603
    %v605 = vsel %vm597, %v584, %v587
    %v606 = vsel %vm600, %v593, 920167782
    %v607 = vsel %vm599, %v590, %v606
    %v608 = vsel %vm598, %v605, %v607
    %v609 = vsel %vm597, %v587, %v590
    %v610 = vsel %vm600, %v596, 1326507024
    %v611 = vsel %vm599, %v593, %v610
    %v612 = vsel %vm598, %v609, %v611
    %v613 = vshll.u32 %v573, 8
    %v614 = vmul.u32.u64.compose %v613, %v612
    %v615 = vextract.low.u32 %v614
    %v616 = vextract.high.u32 %v614
    %v617 = vmul.u32.u64.compose %v613, %v608
    %v618 = vextract.low.u32 %v617
    %v619 = vextract.high.u32 %v617
    %v620 = vmul.u32 %v613, %v604
    %v621 = vadd.s32 %v616, %v618
    %vm622 = vc.u32 %v616, %v618
    %v623 = vadd.s32 %v619, 1
    %v624 = vsel %vm622, %v623, %v619
    %v625 = vadd.s32 %v620, %v624
    %v626 = vadd.s32 %v625, 536870912
    %v627 = vshrl.u32 %v626, 30
    %v628 = vshll.u32 %v627, 30
    %v629 = vsub.s32 %v625, %v628
    %vm630 = vcmp.lt.s32.totalorder %v629, 0
    %v631 = vsub.s32 0, %v629
    %v632 = vsel %vm630, %v631, %v629
    %v633 = vclz %v632
    %v634 = vsub.s32 %v633, 2
    %vm635 = vcmp.gt.s32.totalorder 0, %v634
    %v636 = vsel %vm635, 0, %v634
    %v637 = vsub.s32 32, %v636
    %v638 = vshll.u32 %v629, %v636
    %v639 = vshrl.u32 %v621, %v637
    %v640 = vor.u32 %v638, %v639
    %v641 = vsub.s32 4294967266, %v636
    %v642 = vadd.s32 %v641, 127
    %v643 = vshll.u32 %v642, 23
    %v644 = vor.u32 4788187, %v643
    %v645 = vand.u32 2147483647, %v644
    %v647 = vcvt.s32.f32 %v640
    %v648 = vmul.f32 %v647, %v645
    %v649 = vxor.u32 %v648, 2147483648
    %v650 = vsel %vm567, %v649, %v648
    %v651 = vsub.s32 4, %v627
    %v652 = vsel %vm567, %v651, %v627
    %v653 = vsel %vm566, %v35, %v650
    %v654 = vsel %vm566, 0, %v652
    %v655 = vcosq.f32.pop %v653
    %v656 = vsinq.f32.pop %v653
    %vm657 = vweird.f32 %v35
    %v658 = vadd.s32 %v654, 3
    %v659 = vand.u32 %v658, 3
    %vm660 = vcmp.lt.s32.totalorder %v659, 2
    %vm661 = vcmp.eq.s32.totalorder %v659, 0
    %v662 = vxor.u32 %v656, 2147483648
    %v663 = vsel %vm661, %v655, %v662
    %vm664 = vcmp.eq.s32.totalorder %v659, 2
    %v665 = vxor.u32 %v655, 2147483648
    %v666 = vsel %vm664, %v665, %v656
    %v667 = vsel %vm660, %v663, %v666
    %v668 = vsel %vm657, nan, %v667
    %v669 = vrcp.pop %v357
    %v670 = vmul.f32 1.0, %v669
    %v671 = vmul.f32 %v461, %v670
    %v672 = vmul.f32 %v39, %v254
    %v673 = vmul.f32 %v41, %v150
    %v674 = vadd.f32 %v672, %v673
    %v675 = vmul.f32 %v674, %v671
    %v676 = vadd.f32 %v37, %v675
    %v677 = vmul.f32 %v39, %v150
    %v678 = vmul.f32 %v41, %v254
    %v679 = vsub.f32 %v677, %v678
    %v680 = vmul.f32 %v674, %v670
    %v681 = vmul.f32 %v37, -0.01
    %v682 = vmul.f32 %v39, %v41
    %v683 = vmul.f32 %v682, 0.03
    %v684 = vsub.f32 %v681, %v683
    %v685 = vmul.f32 %v30, 0.8333333
    %v686 = vsub.f32 %v26, %v685
    %v687 = vmul.f32 %v686, 0.125
    %v688 = vadd.f32 %v684, %v687
    %v689 = vmul.f32 %v688, 33.333332
    %v690 = vadd.f32 %v681, %v28
    %v691 = vmul.f32 %v690, 33.333332
    %v692 = vmul.f32 %v41, -0.01
    %v693 = vadd.f32 %v692, %v30
    %v694 = vmul.f32 %v693, 33.333332
    %v695 = vmul.f32 %v150, %v461
    %v696 = vmul.f32 %v695, %v564
    %v697 = vmul.f32 %v254, %v668
    %v698 = vadd.f32 %v696, %v697
    %v699 = vmul.f32 %v698, 0.8333333
    %v700 = vmul.f32 %v699, %v26
    %v701 = vmul.f32 %v43, 0.016666668
    %v702 = vsub.f32 %v700, %v701
    %v703 = vmul.f32 %v695, %v668
    %v704 = vmul.f32 %v254, %v564
    %v705 = vsub.f32 %v703, %v704
    %v706 = vmul.f32 %v705, 0.8333333
    %v707 = vmul.f32 %v706, %v26
    %v708 = vmul.f32 %v45, 0.016666668
    %v709 = vsub.f32 %v707, %v708
    %v710 = vmul.f32 %v26, %v150
    %v711 = vmul.f32 %v710, %v357
    %v712 = vmul.f32 %v47, 0.02
    %v713 = vsub.f32 %v711, %v712
    %v714 = vsub.f32 %v713, 11.772
    %v715 = vmul.f32 %v714, 0.8333333
    %v716 = vmul.f32 %v676, 0.02
    %v717 = vadd.f32 %v31, %v716
    %718 = vst [vmem:[#allocation5] sm:$0xff] %v717
    %v719 = vmul.f32 %v679, 0.02
    %v720 = vadd.f32 %v33, %v719
    %s721 = scalar_lea.vmem [#allocation5], 8
    %722 = vst [vmem:[%s721] sm:$0xff] %v720
    %v723 = vmul.f32 %v680, 0.02
    %v724 = vadd.f32 %v35, %v723
    %s725 = scalar_lea.vmem [#allocation5], 16
    %726 = vst [vmem:[%s725] sm:$0xff] %v724
    %v727 = vmul.f32 %v689, 0.02
    %v728 = vadd.f32 %v37, %v727
    %s729 = scalar_lea.vmem [#allocation5], 24
    %730 = vst [vmem:[%s729] sm:$0xff] %v728
    %v731 = vmul.f32 %v691, 0.02
    %v732 = vadd.f32 %v39, %v731
    %s733 = scalar_lea.vmem [#allocation5], 32
    %734 = vst [vmem:[%s733] sm:$0xff] %v732
    %v735 = vmul.f32 %v694, 0.02
    %v736 = vadd.f32 %v41, %v735
    %s737 = scalar_lea.vmem [#allocation5], 40
    %738 = vst [vmem:[%s737] sm:$0xff] %v736
    %v739 = vmul.f32 %v702, 0.02
    %v740 = vadd.f32 %v43, %v739
    %s741 = scalar_lea.vmem [#allocation5], 48
    %742 = vst [vmem:[%s741] sm:$0xff] %v740
    %v743 = vmul.f32 %v709, 0.02
    %v744 = vadd.f32 %v45, %v743
    %s745 = scalar_lea.vmem [#allocation5], 56
    %746 = vst [vmem:[%s745] sm:$0xff] %v744
    %v747 = vmul.f32 %v715, 0.02
    %v748 = vadd.f32 %v47, %v747
    %s749 = scalar_lea.vmem [#allocation5], 64
    %750 = vst [vmem:[%s749] sm:$0xff] %v748
    // Predicated region
    $region14: #{tpu_custom_call.1} parent=1 // pred_check
      _
    $region15: #{tpu_custom_call.1} parent=1 // pred_check_branch
      %752 = sbr.rel (0) target = $region17
    $region16: #{tpu_custom_call.1} parent=1 // pred_region
      %s754 = ssub.s32 1152, 1152
      %755 = vsyncadd [#allocation4], %s754
      %s756 = sshll.u32 [#allocation5], 4
      %s757 = int_to_ptr.vmem [resolvable:$true] %s756
      %762 = dma.vmem_to_hbm [thread:$0]  %s757, 1152, %s2, [#allocation4], 128, 128, 8
    $region17: #{tpu_custom_call.1} parent=1 // pred_fallthru
      _
    // Predicated region
    $region18: #{tpu_custom_call.1} parent=1 // pred_check
      _
    $region19: #{tpu_custom_call.1} parent=1 // pred_check_branch
      %764 = sbr.rel (0) target = $region21
    $region20: #{tpu_custom_call.1} parent=1 // pred_region
      %765 = dma.done [#allocation4], 1152
    $region21: #{tpu_custom_call.1} parent=1 // pred_fallthru
      _
    %766 = vsyncpa [#allocation3], 1
    %767 = vsyncpa [#allocation4], 1

</llo_original>
